<compile_context>
chip_gen: v5e
topology: v5e:2x2
jax: 0.10.0
libtpu: 0.0.40
codegen_flags: <defaults>
</compile_context>

<pallas_src>
import functools
import math

import jax
import jax.numpy as jnp
from jax.experimental import pallas as pl
from jax.experimental.pallas import tpu as pltpu

_HIDDEN = 100      # poseRaw_bert10.hidden_size
_N_HEADS = 2       # attn_heads
_LN_EPS = 1e-6     # annotated-transformer LayerNorm eps


def _layernorm(x, gamma, beta):
    # gamma * (x - mean) / (std + eps) + beta, std with Bessel correction (torch .std default).
    mean = jnp.mean(x, axis=-1, keepdims=True)
    d = x - mean
    var = jnp.sum(d * d, axis=-1, keepdims=True) / float(x.shape[-1] - 1)
    return gamma * d / (jnp.sqrt(var) + _LN_EPS) + beta


def _gelu(x):
    # tanh-approximate GELU (models/BERT/utils/gelu.py).
    c = math.sqrt(2.0 / math.pi)
    return 0.5 * x * (1.0 + jnp.tanh(c * (x + 0.044715 * x * x * x)))


def _bf16(x):
    return x.astype(jnp.bfloat16)


# --------------------------------------------------------------------------
# Fused BERT-block + classifier kernel (one batch element per grid step)
# --------------------------------------------------------------------------
def _bert_block_kernel(x_ref, ln1g_ref, ln1b_ref,
                       wq_ref, bq_ref, wk_ref, bk_ref, wv_ref, bv_ref,
                       wo_ref, bo_ref, ln2g_ref, ln2b_ref,
                       w1_ref, b1_ref, w2_ref, b2_ref, fcw_ref, fcb_ref,
                       out_ref, logits_ref, *, n_heads):
    h = x_ref[0]                                  # (S, D) f32: CLS + positional already added
    dk = wq_ref.shape[-1]
    inv_sqrt_dk = 1.0 / math.sqrt(dk)

    # ---- attention sub-layer (pre-LN residual): h <- h + Wo(MHA(LN1(h))) + bo ----
    hn = _layernorm(h, ln1g_ref[...], ln1b_ref[...])
    hn16 = _bf16(hn)
    att = jnp.zeros_like(h)
    for i in range(n_heads):                      # static unroll (n_heads = 2)
        q = jnp.dot(hn16, wq_ref[i], preferred_element_type=jnp.float32) + bq_ref[i]
        k = jnp.dot(hn16, wk_ref[i], preferred_element_type=jnp.float32) + bk_ref[i]
        v = jnp.dot(hn16, wv_ref[i], preferred_element_type=jnp.float32) + bv_ref[i]
        s = jnp.dot(_bf16(q), _bf16(k.T),
                    preferred_element_type=jnp.float32) * inv_sqrt_dk   # (S, S)
        s = s - jnp.max(s, axis=-1, keepdims=True)   # eval-mode mask is all ones -> no-op
        p = jnp.exp(s)
        p = p / jnp.sum(p, axis=-1, keepdims=True)   # attention dropout: identity in eval
        o = jnp.dot(_bf16(p), _bf16(v), preferred_element_type=jnp.float32)      # (S, dk)
        att = att + jnp.dot(_bf16(o), wo_ref[i], preferred_element_type=jnp.float32)
    h = h + att + bo_ref[...]

    # ---- feed-forward sub-layer (pre-LN residual): h <- h + W2(GELU(W1(LN2(h)))) ----
    hn2 = _layernorm(h, ln2g_ref[...], ln2b_ref[...])
    f = jnp.dot(_bf16(hn2), w1_ref[...], preferred_element_type=jnp.float32) + b1_ref[...]
    f = _gelu(f)
    f = jnp.dot(_bf16(f), w2_ref[...], preferred_element_type=jnp.float32) + b2_ref[...]
    h = h + f                                     # TransformerBlock trailing dropout: identity

    out_ref[0] = h                                # full BERT output (CLS + sequence)
    cls_tok = h[0:1, :]                           # classification token (Dropout(0.2) = id)
    logits_ref[0] = (jnp.dot(_bf16(cls_tok), fcw_ref[...],
                             preferred_element_type=jnp.float32) + fcb_ref[...])


# --------------------------------------------------------------------------
# Forward wrapper (host-side weight prep + embedding, single pallas_call)
# --------------------------------------------------------------------------
def forward(params, x, length, n_heads=_N_HEADS):
    D = params["wq"].shape[0]                     # hidden_size = 100
    xv = x.reshape(-1, length, D).astype(jnp.float32)
    input_vectors = xv                            # x.view(-1, length, hidden_size)
    B, L, _ = xv.shape
    S = L + 1
    dk = D // n_heads
    C = params["fc_w"].shape[0]
    d_ff = params["w1"].shape[0]

    # BERTEmbedding5 (eval): prepend learned CLS token, add learned positional embedding.
    # Done in plain JAX so the kernel never concatenates at an unaligned sublane offset.
    cls = jnp.broadcast_to(params["cls"].reshape(1, 1, D), (B, 1, D))
    h0 = jnp.concatenate([cls, xv], axis=1) + params["pos"].reshape(1, S, D)

    # torch Linear stores (out, in); kernel consumes (in, out) bf16 matrices with Q/K/V/O
    # pre-split per attention head (d_k = 50 is not lane aligned -> split host-side).
    def head_split_T(w):                          # (D, D) -> (H, D, dk) bf16
        return jnp.stack([w[i * dk:(i + 1) * dk, :].T.astype(jnp.bfloat16)
                          for i in range(n_heads)])

    wq_h = head_split_T(params["wq"])
    wk_h = head_split_T(params["wk"])
    wv_h = head_split_T(params["wv"])
    wo_h = jnp.stack([params["wo"][:, i * dk:(i + 1) * dk].T.astype(jnp.bfloat16)
                      for i in range(n_heads)])   # (H, dk, D)
    bq_h = params["bq"].reshape(n_heads, 1, dk).astype(jnp.float32)
    bk_h = params["bk"].reshape(n_heads, 1, dk).astype(jnp.float32)
    bv_h = params["bv"].reshape(n_heads, 1, dk).astype(jnp.float32)

    row = lambda v: v.reshape(1, -1).astype(jnp.float32)
    const2 = lambda b: (0, 0)
    const3 = lambda b: (0, 0, 0)
    per_b = lambda b: (b, 0, 0)

    bert_out, logits3 = pl.pallas_call(
        functools.partial(_bert_block_kernel, n_heads=n_heads),
        out_shape=(jax.ShapeDtypeStruct((B, S, D), jnp.float32),
                   jax.ShapeDtypeStruct((B, 1, C), jnp.float32)),
        grid=(B,),
        in_specs=[
            pl.BlockSpec((1, S, D), per_b),                                   # embedded acts
            pl.BlockSpec((1, D), const2), pl.BlockSpec((1, D), const2),       # LN1 gamma/beta
            pl.BlockSpec((n_heads, D, dk), const3), pl.BlockSpec((n_heads, 1, dk), const3),  # Wq,bq
            pl.BlockSpec((n_heads, D, dk), const3), pl.BlockSpec((n_heads, 1, dk), const3),  # Wk,bk
            pl.BlockSpec((n_heads, D, dk), const3), pl.BlockSpec((n_heads, 1, dk), const3),  # Wv,bv
            pl.BlockSpec((n_heads, dk, D), const3), pl.BlockSpec((1, D), const2),            # Wo,bo
            pl.BlockSpec((1, D), const2), pl.BlockSpec((1, D), const2),       # LN2 gamma/beta
            pl.BlockSpec((D, d_ff), const2), pl.BlockSpec((1, d_ff), const2), # W1, b1
            pl.BlockSpec((d_ff, D), const2), pl.BlockSpec((1, D), const2),    # W2, b2
            pl.BlockSpec((D, C), const2), pl.BlockSpec((1, C), const2),       # fc_action W, b
        ],
        out_specs=(pl.BlockSpec((1, S, D), per_b),
                   pl.BlockSpec((1, 1, C), per_b)),
        compiler_params=pltpu.CompilerParams(
            dimension_semantics=("parallel",),
            vmem_limit_bytes=32 * 1024 * 1024),
    )(h0,
      row(params["ln1_g"]), row(params["ln1_b"]),
      wq_h, bq_h, wk_h, bk_h, wv_h, bv_h,
      wo_h, row(params["bo"]),
      row(params["ln2_g"]), row(params["ln2_b"]),
      params["w1"].T.astype(jnp.bfloat16), row(params["b1"]),
      params["w2"].T.astype(jnp.bfloat16), row(params["b2"]),
      params["fc_w"].T.astype(jnp.bfloat16), row(params["fc_b"]))

    logits = logits3.reshape(B, C)
    seq_out = bert_out[:, 1:, :]
    # TODO(synk): training-mode Bernoulli frame mask (maskSample) and the Dropout layers
    # (p=0.2 / p=0.1) are not reproduced; this is the eval-mode forward (maskSample=None).
    mask_sample = None
    return logits, input_vectors, seq_out, mask_sample


# --------------------------------------------------------------------------
# Deterministic synthetic parameters (shapes / inits mirror the PyTorch module)
# --------------------------------------------------------------------------
def make_params(key, num_classes, length, hidden=_HIDDEN, d_ff=None):
    if d_ff is None:
        d_ff = 4 * hidden                          # feed_forward_hidden = 4 * hidden
    keys = iter(jax.random.split(key, 24))

    def linear(out_f, in_f):
        bound = 1.0 / math.sqrt(in_f)              # torch nn.Linear default init
        w = jax.random.uniform(next(keys), (out_f, in_f), jnp.float32, -bound, bound)
        b = jax.random.uniform(next(keys), (out_f,), jnp.float32, -bound, bound)
        return w, b

    p = {}
    p["cls"] = (jax.random.normal(next(keys), (1, hidden), jnp.float32)
                * hidden ** -0.5)                  # clsToken: normal_(std=input_dim**-0.5)
    p["pos"] = (jax.random.normal(next(keys), (length + 1, hidden), jnp.float32)
                * 0.02)                            # learned positional embedding
    p["ln1_g"] = jnp.ones((hidden,), jnp.float32)
    p["ln1_b"] = jnp.zeros((hidden,), jnp.float32)
    p["wq"], p["bq"] = linear(hidden, hidden)
    p["wk"], p["bk"] = linear(hidden, hidden)
    p["wv"], p["bv"] = linear(hidden, hidden)
    p["wo"], p["bo"] = linear(hidden, hidden)
    p["ln2_g"] = jnp.ones((hidden,), jnp.float32)
    p["ln2_b"] = jnp.zeros((hidden,), jnp.float32)
    p["w1"], p["b1"] = linear(d_ff, hidden)
    p["w2"], p["b2"] = linear(hidden, d_ff)
    limit = math.sqrt(6.0 / (hidden + num_classes))   # xavier_uniform_
    p["fc_w"] = jax.random.uniform(next(keys), (num_classes, hidden),
                                   jnp.float32, -limit, limit)
    p["fc_b"] = jnp.zeros((num_classes,), jnp.float32)  # fc_action.bias.zero_()
    return p


if __name__ == "__main__":
    num_classes, length, batch = 6, 8, 2
    key = jax.random.PRNGKey(0)
    pkey, xkey = jax.random.split(key)
    params = make_params(pkey, num_classes, length)
    # Pose features: the module only requires x.view(-1, length, hidden_size=100).
    x = jax.random.normal(xkey, (batch, length, _HIDDEN), jnp.float32)

    fwd = jax.jit(functools.partial(forward, length=length))
    logits, input_vectors, seq_out, mask_sample = fwd(params, x)
    jax.block_until_ready((logits, input_vectors, seq_out))

    assert logits.shape == (batch, num_classes)
    assert input_vectors.shape == (batch, length, _HIDDEN)
    assert seq_out.shape == (batch, length, _HIDDEN)
    assert mask_sample is None
    assert bool(jnp.all(jnp.isfinite(logits)))
    assert bool(jnp.all(jnp.isfinite(seq_out)))
    print("KERNEL_OK")
</pallas_src>

<mosaic_0001>
module attributes {stable_mosaic.version = 11 : i64} {
  func.func @_bert_block_kernel(%arg0: i32, %arg1: memref<1x9x100xf32, #tpu.memory_space<vmem>>, %arg2: memref<1x100xf32, #tpu.memory_space<vmem>>, %arg3: memref<1x100xf32, #tpu.memory_space<vmem>>, %arg4: memref<2x100x50xbf16, #tpu.memory_space<vmem>>, %arg5: memref<2x1x50xf32, #tpu.memory_space<vmem>>, %arg6: memref<2x100x50xbf16, #tpu.memory_space<vmem>>, %arg7: memref<2x1x50xf32, #tpu.memory_space<vmem>>, %arg8: memref<2x100x50xbf16, #tpu.memory_space<vmem>>, %arg9: memref<2x1x50xf32, #tpu.memory_space<vmem>>, %arg10: memref<2x50x100xbf16, #tpu.memory_space<vmem>>, %arg11: memref<1x100xf32, #tpu.memory_space<vmem>>, %arg12: memref<1x100xf32, #tpu.memory_space<vmem>>, %arg13: memref<1x100xf32, #tpu.memory_space<vmem>>, %arg14: memref<100x400xbf16, #tpu.memory_space<vmem>>, %arg15: memref<1x400xf32, #tpu.memory_space<vmem>>, %arg16: memref<400x100xbf16, #tpu.memory_space<vmem>>, %arg17: memref<1x100xf32, #tpu.memory_space<vmem>>, %arg18: memref<100x6xbf16, #tpu.memory_space<vmem>>, %arg19: memref<1x6xf32, #tpu.memory_space<vmem>>, %arg20: memref<1x9x100xf32, #tpu.memory_space<vmem>>, %arg21: memref<1x1x6xf32, #tpu.memory_space<vmem>>) attributes {dimension_semantics = [#tpu.dimension_semantics<parallel>], iteration_bounds = array<i64: 2>, scalar_prefetch = 0 : i64, scratch_operands = 0 : i64, tpu.core_type = #tpu.core_type<tc>, window_params = [{transform_indices = @transform_0, window_bounds = array<i64: 1, 9, 100>}, {pipeline_mode = #tpu.pipeline_mode<synchronous>, transform_indices = @transform_1, window_bounds = array<i64: 1, 100>}, {pipeline_mode = #tpu.pipeline_mode<synchronous>, transform_indices = @transform_2, window_bounds = array<i64: 1, 100>}, {pipeline_mode = #tpu.pipeline_mode<synchronous>, transform_indices = @transform_3, window_bounds = array<i64: 2, 100, 50>}, {pipeline_mode = #tpu.pipeline_mode<synchronous>, transform_indices = @transform_4, window_bounds = array<i64: 2, 1, 50>}, {pipeline_mode = #tpu.pipeline_mode<synchronous>, transform_indices = @transform_5, window_bounds = array<i64: 2, 100, 50>}, {pipeline_mode = #tpu.pipeline_mode<synchronous>, transform_indices = @transform_6, window_bounds = array<i64: 2, 1, 50>}, {pipeline_mode = #tpu.pipeline_mode<synchronous>, transform_indices = @transform_7, window_bounds = array<i64: 2, 100, 50>}, {pipeline_mode = #tpu.pipeline_mode<synchronous>, transform_indices = @transform_8, window_bounds = array<i64: 2, 1, 50>}, {pipeline_mode = #tpu.pipeline_mode<synchronous>, transform_indices = @transform_9, window_bounds = array<i64: 2, 50, 100>}, {pipeline_mode = #tpu.pipeline_mode<synchronous>, transform_indices = @transform_10, window_bounds = array<i64: 1, 100>}, {pipeline_mode = #tpu.pipeline_mode<synchronous>, transform_indices = @transform_11, window_bounds = array<i64: 1, 100>}, {pipeline_mode = #tpu.pipeline_mode<synchronous>, transform_indices = @transform_12, window_bounds = array<i64: 1, 100>}, {pipeline_mode = #tpu.pipeline_mode<synchronous>, transform_indices = @transform_13, window_bounds = array<i64: 100, 400>}, {pipeline_mode = #tpu.pipeline_mode<synchronous>, transform_indices = @transform_14, window_bounds = array<i64: 1, 400>}, {pipeline_mode = #tpu.pipeline_mode<synchronous>, transform_indices = @transform_15, window_bounds = array<i64: 400, 100>}, {pipeline_mode = #tpu.pipeline_mode<synchronous>, transform_indices = @transform_16, window_bounds = array<i64: 1, 100>}, {pipeline_mode = #tpu.pipeline_mode<synchronous>, transform_indices = @transform_17, window_bounds = array<i64: 100, 6>}, {pipeline_mode = #tpu.pipeline_mode<synchronous>, transform_indices = @transform_18, window_bounds = array<i64: 1, 6>}, {transform_indices = @transform_19, window_bounds = array<i64: 1, 9, 100>}, {transform_indices = @transform_20, window_bounds = array<i64: 1, 1, 6>}]} {
    %c0 = arith.constant 0 : index
    %c0_0 = arith.constant 0 : index
    %c0_1 = arith.constant 0 : index
    %0 = vector.load %arg1[%c0, %c0_0, %c0_1] : memref<1x9x100xf32, #tpu.memory_space<vmem>>, vector<1x9x100xf32>
    %1 = vector.shape_cast %0 : vector<1x9x100xf32> to vector<9x100xf32>
    %c0_2 = arith.constant 0 : index
    %c0_3 = arith.constant 0 : index
    %2 = vector.load %arg2[%c0_2, %c0_3] : memref<1x100xf32, #tpu.memory_space<vmem>>, vector<1x100xf32>
    %c0_4 = arith.constant 0 : index
    %c0_5 = arith.constant 0 : index
    %3 = vector.load %arg3[%c0_4, %c0_5] : memref<1x100xf32, #tpu.memory_space<vmem>>, vector<1x100xf32>
    %cst = arith.constant dense<0.000000e+00> : vector<9xf32>
    %4 = vector.multi_reduction <add>, %1, %cst [1] : vector<9x100xf32> to vector<9xf32>
    %5 = vector.shape_cast %4 : vector<9xf32> to vector<9x1xf32>
    %cst_6 = arith.constant 1.000000e+02 : f32
    %6 = vector.broadcast %cst_6 : f32 to vector<9x1xf32>
    %7 = arith.divf %5, %6 : vector<9x1xf32>
    %8 = vector.broadcast %7 : vector<9x1xf32> to vector<9x100xf32>
    %9 = arith.subf %1, %8 : vector<9x100xf32>
    %10 = arith.mulf %9, %9 : vector<9x100xf32>
    %cst_7 = arith.constant dense<0.000000e+00> : vector<9xf32>
    %11 = vector.multi_reduction <add>, %10, %cst_7 [1] : vector<9x100xf32> to vector<9xf32>
    %12 = vector.shape_cast %11 : vector<9xf32> to vector<9x1xf32>
    %cst_8 = arith.constant 9.900000e+01 : f32
    %13 = vector.broadcast %cst_8 : f32 to vector<9x1xf32>
    %14 = arith.divf %12, %13 : vector<9x1xf32>
    %15 = vector.broadcast %2 : vector<1x100xf32> to vector<9x100xf32>
    %16 = arith.mulf %15, %9 : vector<9x100xf32>
    %17 = math.sqrt %14 : vector<9x1xf32>
    %cst_9 = arith.constant 9.99999997E-7 : f32
    %18 = vector.broadcast %cst_9 : f32 to vector<9x1xf32>
    %19 = arith.addf %17, %18 : vector<9x1xf32>
    %20 = vector.broadcast %19 : vector<9x1xf32> to vector<9x100xf32>
    %21 = arith.divf %16, %20 : vector<9x100xf32>
    %22 = vector.broadcast %3 : vector<1x100xf32> to vector<9x100xf32>
    %23 = arith.addf %21, %22 : vector<9x100xf32>
    %24 = arith.truncf %23 : vector<9x100xf32> to vector<9x100xbf16>
    %cst_10 = arith.constant 0.000000e+00 : f32
    %25 = vector.broadcast %cst_10 : f32 to vector<9x100xf32>
    %c0_11 = arith.constant 0 : index
    %c0_12 = arith.constant 0 : index
    %c0_13 = arith.constant 0 : index
    %26 = vector.load %arg4[%c0_11, %c0_12, %c0_13] : memref<2x100x50xbf16, #tpu.memory_space<vmem>>, vector<1x100x50xbf16>
    %27 = vector.shape_cast %26 : vector<1x100x50xbf16> to vector<100x50xbf16>
    %cst_14 = arith.constant dense<0.000000e+00> : vector<9x50xf32>
    %28 = tpu.matmul %24, %27, %cst_14 {dimension_numbers = #tpu.dot_dimension_numbers<[1], [0], [0], [1], [0, 0, 1, 1], [], []>} : vector<9x100xbf16>, vector<100x50xbf16>, vector<9x50xf32> -> vector<9x50xf32>
    %c0_15 = arith.constant 0 : index
    %c0_16 = arith.constant 0 : index
    %c0_17 = arith.constant 0 : index
    %29 = vector.load %arg5[%c0_15, %c0_16, %c0_17] : memref<2x1x50xf32, #tpu.memory_space<vmem>>, vector<1x1x50xf32>
    %30 = vector.shape_cast %29 : vector<1x1x50xf32> to vector<1x50xf32>
    %31 = vector.broadcast %30 : vector<1x50xf32> to vector<9x50xf32>
    %32 = arith.addf %28, %31 : vector<9x50xf32>
    %c0_18 = arith.constant 0 : index
    %c0_19 = arith.constant 0 : index
    %c0_20 = arith.constant 0 : index
    %33 = vector.load %arg6[%c0_18, %c0_19, %c0_20] : memref<2x100x50xbf16, #tpu.memory_space<vmem>>, vector<1x100x50xbf16>
    %34 = vector.shape_cast %33 : vector<1x100x50xbf16> to vector<100x50xbf16>
    %cst_21 = arith.constant dense<0.000000e+00> : vector<9x50xf32>
    %35 = tpu.matmul %24, %34, %cst_21 {dimension_numbers = #tpu.dot_dimension_numbers<[1], [0], [0], [1], [0, 0, 1, 1], [], []>} : vector<9x100xbf16>, vector<100x50xbf16>, vector<9x50xf32> -> vector<9x50xf32>
    %c0_22 = arith.constant 0 : index
    %c0_23 = arith.constant 0 : index
    %c0_24 = arith.constant 0 : index
    %36 = vector.load %arg7[%c0_22, %c0_23, %c0_24] : memref<2x1x50xf32, #tpu.memory_space<vmem>>, vector<1x1x50xf32>
    %37 = vector.shape_cast %36 : vector<1x1x50xf32> to vector<1x50xf32>
    %38 = vector.broadcast %37 : vector<1x50xf32> to vector<9x50xf32>
    %39 = arith.addf %35, %38 : vector<9x50xf32>
    %c0_25 = arith.constant 0 : index
    %c0_26 = arith.constant 0 : index
    %c0_27 = arith.constant 0 : index
    %40 = vector.load %arg8[%c0_25, %c0_26, %c0_27] : memref<2x100x50xbf16, #tpu.memory_space<vmem>>, vector<1x100x50xbf16>
    %41 = vector.shape_cast %40 : vector<1x100x50xbf16> to vector<100x50xbf16>
    %cst_28 = arith.constant dense<0.000000e+00> : vector<9x50xf32>
    %42 = tpu.matmul %24, %41, %cst_28 {dimension_numbers = #tpu.dot_dimension_numbers<[1], [0], [0], [1], [0, 0, 1, 1], [], []>} : vector<9x100xbf16>, vector<100x50xbf16>, vector<9x50xf32> -> vector<9x50xf32>
    %c0_29 = arith.constant 0 : index
    %c0_30 = arith.constant 0 : index
    %c0_31 = arith.constant 0 : index
    %43 = vector.load %arg9[%c0_29, %c0_30, %c0_31] : memref<2x1x50xf32, #tpu.memory_space<vmem>>, vector<1x1x50xf32>
    %44 = vector.shape_cast %43 : vector<1x1x50xf32> to vector<1x50xf32>
    %45 = vector.broadcast %44 : vector<1x50xf32> to vector<9x50xf32>
    %46 = arith.addf %42, %45 : vector<9x50xf32>
    %47 = arith.truncf %32 : vector<9x50xf32> to vector<9x50xbf16>
    %48 = tpu.transpose %39, [1, 0] : vector<9x50xf32> -> vector<50x9xf32>
    %49 = arith.truncf %48 : vector<50x9xf32> to vector<50x9xbf16>
    %cst_32 = arith.constant dense<0.000000e+00> : vector<9x9xf32>
    %50 = tpu.matmul %47, %49, %cst_32 {dimension_numbers = #tpu.dot_dimension_numbers<[1], [0], [0], [1], [0, 0, 1, 1], [], []>} : vector<9x50xbf16>, vector<50x9xbf16>, vector<9x9xf32> -> vector<9x9xf32>
    %cst_33 = arith.constant 0.141421363 : f32
    %51 = vector.broadcast %cst_33 : f32 to vector<9x9xf32>
    %52 = arith.mulf %50, %51 : vector<9x9xf32>
    %cst_34 = arith.constant dense<0xFF800000> : vector<9xf32>
    %53 = vector.multi_reduction <maximumf>, %52, %cst_34 [1] : vector<9x9xf32> to vector<9xf32>
    %54 = vector.shape_cast %53 : vector<9xf32> to vector<9x1xf32>
    %55 = vector.broadcast %54 : vector<9x1xf32> to vector<9x9xf32>
    %56 = arith.subf %52, %55 : vector<9x9xf32>
    %57 = math.exp %56 : vector<9x9xf32>
    %cst_35 = arith.constant dense<0.000000e+00> : vector<9xf32>
    %58 = vector.multi_reduction <add>, %57, %cst_35 [1] : vector<9x9xf32> to vector<9xf32>
    %59 = vector.shape_cast %58 : vector<9xf32> to vector<9x1xf32>
    %60 = vector.broadcast %59 : vector<9x1xf32> to vector<9x9xf32>
    %61 = arith.divf %57, %60 : vector<9x9xf32>
    %62 = arith.truncf %61 : vector<9x9xf32> to vector<9x9xbf16>
    %63 = arith.truncf %46 : vector<9x50xf32> to vector<9x50xbf16>
    %cst_36 = arith.constant dense<0.000000e+00> : vector<9x50xf32>
    %64 = tpu.matmul %62, %63, %cst_36 {dimension_numbers = #tpu.dot_dimension_numbers<[1], [0], [0], [1], [0, 0, 1, 1], [], []>} : vector<9x9xbf16>, vector<9x50xbf16>, vector<9x50xf32> -> vector<9x50xf32>
    %65 = arith.truncf %64 : vector<9x50xf32> to vector<9x50xbf16>
    %c0_37 = arith.constant 0 : index
    %c0_38 = arith.constant 0 : index
    %c0_39 = arith.constant 0 : index
    %66 = vector.load %arg10[%c0_37, %c0_38, %c0_39] : memref<2x50x100xbf16, #tpu.memory_space<vmem>>, vector<1x50x100xbf16>
    %67 = vector.shape_cast %66 : vector<1x50x100xbf16> to vector<50x100xbf16>
    %cst_40 = arith.constant dense<0.000000e+00> : vector<9x100xf32>
    %68 = tpu.matmul %65, %67, %cst_40 {dimension_numbers = #tpu.dot_dimension_numbers<[1], [0], [0], [1], [0, 0, 1, 1], [], []>} : vector<9x50xbf16>, vector<50x100xbf16>, vector<9x100xf32> -> vector<9x100xf32>
    %69 = arith.addf %25, %68 : vector<9x100xf32>
    %c1 = arith.constant 1 : index
    %c0_41 = arith.constant 0 : index
    %c0_42 = arith.constant 0 : index
    %70 = vector.load %arg4[%c1, %c0_41, %c0_42] : memref<2x100x50xbf16, #tpu.memory_space<vmem>>, vector<1x100x50xbf16>
    %71 = vector.shape_cast %70 : vector<1x100x50xbf16> to vector<100x50xbf16>
    %cst_43 = arith.constant dense<0.000000e+00> : vector<9x50xf32>
    %72 = tpu.matmul %24, %71, %cst_43 {dimension_numbers = #tpu.dot_dimension_numbers<[1], [0], [0], [1], [0, 0, 1, 1], [], []>} : vector<9x100xbf16>, vector<100x50xbf16>, vector<9x50xf32> -> vector<9x50xf32>
    %c1_44 = arith.constant 1 : index
    %c0_45 = arith.constant 0 : index
    %c0_46 = arith.constant 0 : index
    %73 = vector.load %arg5[%c1_44, %c0_45, %c0_46] : memref<2x1x50xf32, #tpu.memory_space<vmem>>, vector<1x1x50xf32>
    %74 = vector.shape_cast %73 : vector<1x1x50xf32> to vector<1x50xf32>
    %75 = vector.broadcast %74 : vector<1x50xf32> to vector<9x50xf32>
    %76 = arith.addf %72, %75 : vector<9x50xf32>
    %c1_47 = arith.constant 1 : index
    %c0_48 = arith.constant 0 : index
    %c0_49 = arith.constant 0 : index
    %77 = vector.load %arg6[%c1_47, %c0_48, %c0_49] : memref<2x100x50xbf16, #tpu.memory_space<vmem>>, vector<1x100x50xbf16>
    %78 = vector.shape_cast %77 : vector<1x100x50xbf16> to vector<100x50xbf16>
    %cst_50 = arith.constant dense<0.000000e+00> : vector<9x50xf32>
    %79 = tpu.matmul %24, %78, %cst_50 {dimension_numbers = #tpu.dot_dimension_numbers<[1], [0], [0], [1], [0, 0, 1, 1], [], []>} : vector<9x100xbf16>, vector<100x50xbf16>, vector<9x50xf32> -> vector<9x50xf32>
    %c1_51 = arith.constant 1 : index
    %c0_52 = arith.constant 0 : index
    %c0_53 = arith.constant 0 : index
    %80 = vector.load %arg7[%c1_51, %c0_52, %c0_53] : memref<2x1x50xf32, #tpu.memory_space<vmem>>, vector<1x1x50xf32>
    %81 = vector.shape_cast %80 : vector<1x1x50xf32> to vector<1x50xf32>
    %82 = vector.broadcast %81 : vector<1x50xf32> to vector<9x50xf32>
    %83 = arith.addf %79, %82 : vector<9x50xf32>
    %c1_54 = arith.constant 1 : index
    %c0_55 = arith.constant 0 : index
    %c0_56 = arith.constant 0 : index
    %84 = vector.load %arg8[%c1_54, %c0_55, %c0_56] : memref<2x100x50xbf16, #tpu.memory_space<vmem>>, vector<1x100x50xbf16>
    %85 = vector.shape_cast %84 : vector<1x100x50xbf16> to vector<100x50xbf16>
    %cst_57 = arith.constant dense<0.000000e+00> : vector<9x50xf32>
    %86 = tpu.matmul %24, %85, %cst_57 {dimension_numbers = #tpu.dot_dimension_numbers<[1], [0], [0], [1], [0, 0, 1, 1], [], []>} : vector<9x100xbf16>, vector<100x50xbf16>, vector<9x50xf32> -> vector<9x50xf32>
    %c1_58 = arith.constant 1 : index
    %c0_59 = arith.constant 0 : index
    %c0_60 = arith.constant 0 : index
    %87 = vector.load %arg9[%c1_58, %c0_59, %c0_60] : memref<2x1x50xf32, #tpu.memory_space<vmem>>, vector<1x1x50xf32>
    %88 = vector.shape_cast %87 : vector<1x1x50xf32> to vector<1x50xf32>
    %89 = vector.broadcast %88 : vector<1x50xf32> to vector<9x50xf32>
    %90 = arith.addf %86, %89 : vector<9x50xf32>
    %91 = arith.truncf %76 : vector<9x50xf32> to vector<9x50xbf16>
    %92 = tpu.transpose %83, [1, 0] : vector<9x50xf32> -> vector<50x9xf32>
    %93 = arith.truncf %92 : vector<50x9xf32> to vector<50x9xbf16>
    %cst_61 = arith.constant dense<0.000000e+00> : vector<9x9xf32>
    %94 = tpu.matmul %91, %93, %cst_61 {dimension_numbers = #tpu.dot_dimension_numbers<[1], [0], [0], [1], [0, 0, 1, 1], [], []>} : vector<9x50xbf16>, vector<50x9xbf16>, vector<9x9xf32> -> vector<9x9xf32>
    %cst_62 = arith.constant 0.141421363 : f32
    %95 = vector.broadcast %cst_62 : f32 to vector<9x9xf32>
    %96 = arith.mulf %94, %95 : vector<9x9xf32>
    %cst_63 = arith.constant dense<0xFF800000> : vector<9xf32>
    %97 = vector.multi_reduction <maximumf>, %96, %cst_63 [1] : vector<9x9xf32> to vector<9xf32>
    %98 = vector.shape_cast %97 : vector<9xf32> to vector<9x1xf32>
    %99 = vector.broadcast %98 : vector<9x1xf32> to vector<9x9xf32>
    %100 = arith.subf %96, %99 : vector<9x9xf32>
    %101 = math.exp %100 : vector<9x9xf32>
    %cst_64 = arith.constant dense<0.000000e+00> : vector<9xf32>
    %102 = vector.multi_reduction <add>, %101, %cst_64 [1] : vector<9x9xf32> to vector<9xf32>
    %103 = vector.shape_cast %102 : vector<9xf32> to vector<9x1xf32>
    %104 = vector.broadcast %103 : vector<9x1xf32> to vector<9x9xf32>
    %105 = arith.divf %101, %104 : vector<9x9xf32>
    %106 = arith.truncf %105 : vector<9x9xf32> to vector<9x9xbf16>
    %107 = arith.truncf %90 : vector<9x50xf32> to vector<9x50xbf16>
    %cst_65 = arith.constant dense<0.000000e+00> : vector<9x50xf32>
    %108 = tpu.matmul %106, %107, %cst_65 {dimension_numbers = #tpu.dot_dimension_numbers<[1], [0], [0], [1], [0, 0, 1, 1], [], []>} : vector<9x9xbf16>, vector<9x50xbf16>, vector<9x50xf32> -> vector<9x50xf32>
    %109 = arith.truncf %108 : vector<9x50xf32> to vector<9x50xbf16>
    %c1_66 = arith.constant 1 : index
    %c0_67 = arith.constant 0 : index
    %c0_68 = arith.constant 0 : index
    %110 = vector.load %arg10[%c1_66, %c0_67, %c0_68] : memref<2x50x100xbf16, #tpu.memory_space<vmem>>, vector<1x50x100xbf16>
    %111 = vector.shape_cast %110 : vector<1x50x100xbf16> to vector<50x100xbf16>
    %cst_69 = arith.constant dense<0.000000e+00> : vector<9x100xf32>
    %112 = tpu.matmul %109, %111, %cst_69 {dimension_numbers = #tpu.dot_dimension_numbers<[1], [0], [0], [1], [0, 0, 1, 1], [], []>} : vector<9x50xbf16>, vector<50x100xbf16>, vector<9x100xf32> -> vector<9x100xf32>
    %113 = arith.addf %69, %112 : vector<9x100xf32>
    %114 = arith.addf %1, %113 : vector<9x100xf32>
    %c0_70 = arith.constant 0 : index
    %c0_71 = arith.constant 0 : index
    %115 = vector.load %arg11[%c0_70, %c0_71] : memref<1x100xf32, #tpu.memory_space<vmem>>, vector<1x100xf32>
    %116 = vector.broadcast %115 : vector<1x100xf32> to vector<9x100xf32>
    %117 = arith.addf %114, %116 : vector<9x100xf32>
    %c0_72 = arith.constant 0 : index
    %c0_73 = arith.constant 0 : index
    %118 = vector.load %arg12[%c0_72, %c0_73] : memref<1x100xf32, #tpu.memory_space<vmem>>, vector<1x100xf32>
    %c0_74 = arith.constant 0 : index
    %c0_75 = arith.constant 0 : index
    %119 = vector.load %arg13[%c0_74, %c0_75] : memref<1x100xf32, #tpu.memory_space<vmem>>, vector<1x100xf32>
    %cst_76 = arith.constant dense<0.000000e+00> : vector<9xf32>
    %120 = vector.multi_reduction <add>, %117, %cst_76 [1] : vector<9x100xf32> to vector<9xf32>
    %121 = vector.shape_cast %120 : vector<9xf32> to vector<9x1xf32>
    %cst_77 = arith.constant 1.000000e+02 : f32
    %122 = vector.broadcast %cst_77 : f32 to vector<9x1xf32>
    %123 = arith.divf %121, %122 : vector<9x1xf32>
    %124 = vector.broadcast %123 : vector<9x1xf32> to vector<9x100xf32>
    %125 = arith.subf %117, %124 : vector<9x100xf32>
    %126 = arith.mulf %125, %125 : vector<9x100xf32>
    %cst_78 = arith.constant dense<0.000000e+00> : vector<9xf32>
    %127 = vector.multi_reduction <add>, %126, %cst_78 [1] : vector<9x100xf32> to vector<9xf32>
    %128 = vector.shape_cast %127 : vector<9xf32> to vector<9x1xf32>
    %cst_79 = arith.constant 9.900000e+01 : f32
    %129 = vector.broadcast %cst_79 : f32 to vector<9x1xf32>
    %130 = arith.divf %128, %129 : vector<9x1xf32>
    %131 = vector.broadcast %118 : vector<1x100xf32> to vector<9x100xf32>
    %132 = arith.mulf %131, %125 : vector<9x100xf32>
    %133 = math.sqrt %130 : vector<9x1xf32>
    %cst_80 = arith.constant 9.99999997E-7 : f32
    %134 = vector.broadcast %cst_80 : f32 to vector<9x1xf32>
    %135 = arith.addf %133, %134 : vector<9x1xf32>
    %136 = vector.broadcast %135 : vector<9x1xf32> to vector<9x100xf32>
    %137 = arith.divf %132, %136 : vector<9x100xf32>
    %138 = vector.broadcast %119 : vector<1x100xf32> to vector<9x100xf32>
    %139 = arith.addf %137, %138 : vector<9x100xf32>
    %140 = arith.truncf %139 : vector<9x100xf32> to vector<9x100xbf16>
    %c0_81 = arith.constant 0 : index
    %c0_82 = arith.constant 0 : index
    %141 = vector.load %arg14[%c0_81, %c0_82] : memref<100x400xbf16, #tpu.memory_space<vmem>>, vector<100x400xbf16>
    %cst_83 = arith.constant dense<0.000000e+00> : vector<9x400xf32>
    %142 = tpu.matmul %140, %141, %cst_83 {dimension_numbers = #tpu.dot_dimension_numbers<[1], [0], [0], [1], [0, 0, 1, 1], [], []>} : vector<9x100xbf16>, vector<100x400xbf16>, vector<9x400xf32> -> vector<9x400xf32>
    %c0_84 = arith.constant 0 : index
    %c0_85 = arith.constant 0 : index
    %143 = vector.load %arg15[%c0_84, %c0_85] : memref<1x400xf32, #tpu.memory_space<vmem>>, vector<1x400xf32>
    %144 = vector.broadcast %143 : vector<1x400xf32> to vector<9x400xf32>
    %145 = arith.addf %142, %144 : vector<9x400xf32>
    %cst_86 = arith.constant 5.000000e-01 : f32
    %146 = vector.broadcast %cst_86 : f32 to vector<9x400xf32>
    %147 = arith.mulf %146, %145 : vector<9x400xf32>
    %cst_87 = arith.constant 4.471500e-02 : f32
    %148 = vector.broadcast %cst_87 : f32 to vector<9x400xf32>
    %149 = arith.mulf %148, %145 : vector<9x400xf32>
    %150 = arith.mulf %149, %145 : vector<9x400xf32>
    %151 = arith.mulf %150, %145 : vector<9x400xf32>
    %152 = arith.addf %145, %151 : vector<9x400xf32>
    %cst_88 = arith.constant 0.797884583 : f32
    %153 = vector.broadcast %cst_88 : f32 to vector<9x400xf32>
    %154 = arith.mulf %153, %152 : vector<9x400xf32>
    %155 = math.tanh %154 : vector<9x400xf32>
    %cst_89 = arith.constant 1.000000e+00 : f32
    %156 = vector.broadcast %cst_89 : f32 to vector<9x400xf32>
    %157 = arith.addf %156, %155 : vector<9x400xf32>
    %158 = arith.mulf %147, %157 : vector<9x400xf32>
    %159 = arith.truncf %158 : vector<9x400xf32> to vector<9x400xbf16>
    %c0_90 = arith.constant 0 : index
    %c0_91 = arith.constant 0 : index
    %160 = vector.load %arg16[%c0_90, %c0_91] : memref<400x100xbf16, #tpu.memory_space<vmem>>, vector<400x100xbf16>
    %cst_92 = arith.constant dense<0.000000e+00> : vector<9x100xf32>
    %161 = tpu.matmul %159, %160, %cst_92 {dimension_numbers = #tpu.dot_dimension_numbers<[1], [0], [0], [1], [0, 0, 1, 1], [], []>} : vector<9x400xbf16>, vector<400x100xbf16>, vector<9x100xf32> -> vector<9x100xf32>
    %c0_93 = arith.constant 0 : index
    %c0_94 = arith.constant 0 : index
    %162 = vector.load %arg17[%c0_93, %c0_94] : memref<1x100xf32, #tpu.memory_space<vmem>>, vector<1x100xf32>
    %163 = vector.broadcast %162 : vector<1x100xf32> to vector<9x100xf32>
    %164 = arith.addf %161, %163 : vector<9x100xf32>
    %165 = arith.addf %117, %164 : vector<9x100xf32>
    %c0_95 = arith.constant 0 : index
    %c0_96 = arith.constant 0 : index
    %c0_97 = arith.constant 0 : index
    %166 = vector.load %arg20[%c0_95, %c0_96, %c0_97] : memref<1x9x100xf32, #tpu.memory_space<vmem>>, vector<1x9x100xf32>
    %167 = vector.shape_cast %166 : vector<1x9x100xf32> to vector<9x100xf32>
    %168 = vector.shape_cast %165 : vector<9x100xf32> to vector<1x9x100xf32>
    tpu.vector_store %arg20[%c0_95, %c0_96, %c0_97], %168 {strides = array<i32>} : memref<1x9x100xf32, #tpu.memory_space<vmem>>, vector<1x9x100xf32>,
    %169 = vector.extract_strided_slice %165 {offsets = [0, 0], sizes = [1, 100], strides = [1, 1]} : vector<9x100xf32> to vector<1x100xf32>
    %170 = arith.truncf %169 : vector<1x100xf32> to vector<1x100xbf16>
    %c0_98 = arith.constant 0 : index
    %c0_99 = arith.constant 0 : index
    %171 = vector.load %arg18[%c0_98, %c0_99] : memref<100x6xbf16, #tpu.memory_space<vmem>>, vector<100x6xbf16>
    %cst_100 = arith.constant dense<0.000000e+00> : vector<1x6xf32>
    %172 = tpu.matmul %170, %171, %cst_100 {dimension_numbers = #tpu.dot_dimension_numbers<[1], [0], [0], [1], [0, 0, 1, 1], [], []>} : vector<1x100xbf16>, vector<100x6xbf16>, vector<1x6xf32> -> vector<1x6xf32>
    %c0_101 = arith.constant 0 : index
    %c0_102 = arith.constant 0 : index
    %173 = vector.load %arg19[%c0_101, %c0_102] : memref<1x6xf32, #tpu.memory_space<vmem>>, vector<1x6xf32>
    %174 = arith.addf %172, %173 : vector<1x6xf32>
    %c0_103 = arith.constant 0 : index
    %c0_104 = arith.constant 0 : index
    %c0_105 = arith.constant 0 : index
    %175 = vector.load %arg21[%c0_103, %c0_104, %c0_105] : memref<1x1x6xf32, #tpu.memory_space<vmem>>, vector<1x1x6xf32>
    %176 = vector.shape_cast %175 : vector<1x1x6xf32> to vector<1x6xf32>
    %177 = vector.shape_cast %174 : vector<1x6xf32> to vector<1x1x6xf32>
    tpu.vector_store %arg21[%c0_103, %c0_104, %c0_105], %177 {strides = array<i32>} : memref<1x1x6xf32, #tpu.memory_space<vmem>>, vector<1x1x6xf32>,
    return
  }
  func.func @transform_0(%arg0: i32) -> (i32, i32, i32) {
    %c0_i32 = arith.constant 0 : i32
    %c0_i32_0 = arith.constant 0 : i32
    %c0_i32_1 = arith.constant 0 : i32
    return %arg0, %c0_i32, %c0_i32_0 : i32, i32, i32
  }
  func.func @transform_1(%arg0: i32) -> (i32, i32) {
    %c0_i32 = arith.constant 0 : i32
    %c0_i32_0 = arith.constant 0 : i32
    %c0_i32_1 = arith.constant 0 : i32
    return %c0_i32, %c0_i32_0 : i32, i32
  }
  func.func @transform_2(%arg0: i32) -> (i32, i32) {
    %c0_i32 = arith.constant 0 : i32
    %c0_i32_0 = arith.constant 0 : i32
    %c0_i32_1 = arith.constant 0 : i32
    return %c0_i32, %c0_i32_0 : i32, i32
  }
  func.func @transform_3(%arg0: i32) -> (i32, i32, i32) {
    %c0_i32 = arith.constant 0 : i32
    %c0_i32_0 = arith.constant 0 : i32
    %c0_i32_1 = arith.constant 0 : i32
    %c0_i32_2 = arith.constant 0 : i32
    return %c0_i32, %c0_i32_0, %c0_i32_1 : i32, i32, i32
  }
  func.func @transform_4(%arg0: i32) -> (i32, i32, i32) {
    %c0_i32 = arith.constant 0 : i32
    %c0_i32_0 = arith.constant 0 : i32
    %c0_i32_1 = arith.constant 0 : i32
    %c0_i32_2 = arith.constant 0 : i32
    return %c0_i32, %c0_i32_0, %c0_i32_1 : i32, i32, i32
  }
  func.func @transform_5(%arg0: i32) -> (i32, i32, i32) {
    %c0_i32 = arith.constant 0 : i32
    %c0_i32_0 = arith.constant 0 : i32
    %c0_i32_1 = arith.constant 0 : i32
    %c0_i32_2 = arith.constant 0 : i32
    return %c0_i32, %c0_i32_0, %c0_i32_1 : i32, i32, i32
  }
  func.func @transform_6(%arg0: i32) -> (i32, i32, i32) {
    %c0_i32 = arith.constant 0 : i32
    %c0_i32_0 = arith.constant 0 : i32
    %c0_i32_1 = arith.constant 0 : i32
    %c0_i32_2 = arith.constant 0 : i32
    return %c0_i32, %c0_i32_0, %c0_i32_1 : i32, i32, i32
  }
  func.func @transform_7(%arg0: i32) -> (i32, i32, i32) {
    %c0_i32 = arith.constant 0 : i32
    %c0_i32_0 = arith.constant 0 : i32
    %c0_i32_1 = arith.constant 0 : i32
    %c0_i32_2 = arith.constant 0 : i32
    return %c0_i32, %c0_i32_0, %c0_i32_1 : i32, i32, i32
  }
  func.func @transform_8(%arg0: i32) -> (i32, i32, i32) {
    %c0_i32 = arith.constant 0 : i32
    %c0_i32_0 = arith.constant 0 : i32
    %c0_i32_1 = arith.constant 0 : i32
    %c0_i32_2 = arith.constant 0 : i32
    return %c0_i32, %c0_i32_0, %c0_i32_1 : i32, i32, i32
  }
  func.func @transform_9(%arg0: i32) -> (i32, i32, i32) {
    %c0_i32 = arith.constant 0 : i32
    %c0_i32_0 = arith.constant 0 : i32
    %c0_i32_1 = arith.constant 0 : i32
    %c0_i32_2 = arith.constant 0 : i32
    return %c0_i32, %c0_i32_0, %c0_i32_1 : i32, i32, i32
  }
  func.func @transform_10(%arg0: i32) -> (i32, i32) {
    %c0_i32 = arith.constant 0 : i32
    %c0_i32_0 = arith.constant 0 : i32
    %c0_i32_1 = arith.constant 0 : i32
    return %c0_i32, %c0_i32_0 : i32, i32
  }
  func.func @transform_11(%arg0: i32) -> (i32, i32) {
    %c0_i32 = arith.constant 0 : i32
    %c0_i32_0 = arith.constant 0 : i32
    %c0_i32_1 = arith.constant 0 : i32
    return %c0_i32, %c0_i32_0 : i32, i32
  }
  func.func @transform_12(%arg0: i32) -> (i32, i32) {
    %c0_i32 = arith.constant 0 : i32
    %c0_i32_0 = arith.constant 0 : i32
    %c0_i32_1 = arith.constant 0 : i32
    return %c0_i32, %c0_i32_0 : i32, i32
  }
  func.func @transform_13(%arg0: i32) -> (i32, i32) {
    %c0_i32 = arith.constant 0 : i32
    %c0_i32_0 = arith.constant 0 : i32
    %c0_i32_1 = arith.constant 0 : i32
    return %c0_i32, %c0_i32_0 : i32, i32
  }
  func.func @transform_14(%arg0: i32) -> (i32, i32) {
    %c0_i32 = arith.constant 0 : i32
    %c0_i32_0 = arith.constant 0 : i32
    %c0_i32_1 = arith.constant 0 : i32
    return %c0_i32, %c0_i32_0 : i32, i32
  }
  func.func @transform_15(%arg0: i32) -> (i32, i32) {
    %c0_i32 = arith.constant 0 : i32
    %c0_i32_0 = arith.constant 0 : i32
    %c0_i32_1 = arith.constant 0 : i32
    return %c0_i32, %c0_i32_0 : i32, i32
  }
  func.func @transform_16(%arg0: i32) -> (i32, i32) {
    %c0_i32 = arith.constant 0 : i32
    %c0_i32_0 = arith.constant 0 : i32
    %c0_i32_1 = arith.constant 0 : i32
    return %c0_i32, %c0_i32_0 : i32, i32
  }
  func.func @transform_17(%arg0: i32) -> (i32, i32) {
    %c0_i32 = arith.constant 0 : i32
    %c0_i32_0 = arith.constant 0 : i32
    %c0_i32_1 = arith.constant 0 : i32
    return %c0_i32, %c0_i32_0 : i32, i32
  }
  func.func @transform_18(%arg0: i32) -> (i32, i32) {
    %c0_i32 = arith.constant 0 : i32
    %c0_i32_0 = arith.constant 0 : i32
    %c0_i32_1 = arith.constant 0 : i32
    return %c0_i32, %c0_i32_0 : i32, i32
  }
  func.func @transform_19(%arg0: i32) -> (i32, i32, i32) {
    %c0_i32 = arith.constant 0 : i32
    %c0_i32_0 = arith.constant 0 : i32
    %c0_i32_1 = arith.constant 0 : i32
    return %arg0, %c0_i32, %c0_i32_0 : i32, i32, i32
  }
  func.func @transform_20(%arg0: i32) -> (i32, i32, i32) {
    %c0_i32 = arith.constant 0 : i32
    %c0_i32_0 = arith.constant 0 : i32
    %c0_i32_1 = arith.constant 0 : i32
    return %arg0, %c0_i32, %c0_i32_0 : i32, i32, i32
  }
}

</mosaic_0001>

<llo_original>
// kernel: forward.1
$region0: #{forward.1}
  #allocation0 [shape = 'u32[]', space=smem, size = 0x4, offset = 0x4, fixed_abs, tag = 'smem constant byte address 0x4 - core index']
  #allocation1 [shape = 'u32[72,128]{1,0:T(1,128)}', space=vmem, size = 0x9000, scoped, tag = 'internal scratch']
  %s0 = inlined_call_operand.vmem [shape: f32[2,9,100], index: 0, kind: input, shape index: {}]
  %s1 = inlined_call_operand.vmem [shape: f32[1,100], index: 1, kind: input, shape index: {}]
  %s2 = inlined_call_operand.vmem [shape: f32[1,100], index: 2, kind: input, shape index: {}]
  %s3 = inlined_call_operand.vmem [shape: bf16[2,100,50], index: 3, kind: input, shape index: {}]
  %s4 = inlined_call_operand.vmem [shape: f32[2,1,50], index: 4, kind: input, shape index: {}]
  %s5 = inlined_call_operand.vmem [shape: bf16[2,100,50], index: 5, kind: input, shape index: {}]
  %s6 = inlined_call_operand.vmem [shape: f32[2,1,50], index: 6, kind: input, shape index: {}]
  %s7 = inlined_call_operand.vmem [shape: bf16[2,100,50], index: 7, kind: input, shape index: {}]
  %s8 = inlined_call_operand.vmem [shape: f32[2,1,50], index: 8, kind: input, shape index: {}]
  %s9 = inlined_call_operand.vmem [shape: bf16[2,50,100], index: 9, kind: input, shape index: {}]
  %s10 = inlined_call_operand.vmem [shape: f32[1,100], index: 10, kind: input, shape index: {}]
  %s11 = inlined_call_operand.vmem [shape: f32[1,100], index: 11, kind: input, shape index: {}]
  %s12 = inlined_call_operand.vmem [shape: f32[1,100], index: 12, kind: input, shape index: {}]
  %s13 = inlined_call_operand.vmem [shape: bf16[100,400], index: 13, kind: input, shape index: {}]
  %s14 = inlined_call_operand.vmem [shape: f32[1,400], index: 14, kind: input, shape index: {}]
  %s15 = inlined_call_operand.vmem [shape: bf16[400,100], index: 15, kind: input, shape index: {}]
  %s16 = inlined_call_operand.vmem [shape: f32[1,100], index: 16, kind: input, shape index: {}]
  %s17 = inlined_call_operand.vmem [shape: bf16[100,6], index: 17, kind: input, shape index: {}]
  %s18 = inlined_call_operand.vmem [shape: f32[1,6], index: 18, kind: input, shape index: {}]
  %s19 = inlined_call_operand.vmem [shape: f32[2,9,100], index: 19, kind: output, shape index: {0}]
  %s20 = inlined_call_operand.hbm [shape: f32[2,1,6], index: 20, kind: output, shape index: {1}]
  %21 = xla_tuple %s19, %s20
  %s22 = sld [smem:[#allocation0]]
  $region117: #{forward.1} parent=0
    _
  %s24 = ssub.s32 1, %s22
  %s25 = scalar_select 0, %s24, %s22
  $region1: #{forward.1} parent=0
    #allocation2 [shape = 'u8[1024]{0}', space=vmem, size = 0x400, scoped, tag = 'output window, operand 1']
    #allocation3 [shape = 's32[2]{0}', space=sflag, size = 0x8, scoped, tag = 'scoped memory for forward.1']
    %26 = vsyncpa [#allocation3], 0
    %s27 = scalar_lea.sflag [#allocation3], 1
    %28 = vsyncpa %s27, 0
    loop: start=0, step=1, limit=4
    $region2: #{forward.1} parent=1 // loop_pre_header
      _
    $region3: #{forward.1} parent=1 // loop_header
      %s30 = sphi 0, %s34
      %p31 = scmp.ge.s32.totalorder %s30, 4
      %s40 = sphi 0, %s42
      %s43 = sphi 0, %s40
      %s44 = sphi 0, %s43
      %s60 = sphi 0, %s44
      %s64 = sphi 0, %s64
      %s66 = sphi 0, %s64
      %s67 = sphi 0, %s66
      %s81 = sphi 0, %s67
      %s85 = sphi 0, %s85
      %s87 = sphi 0, %s85
      %s88 = sphi 0, %s87
      %s102 = sphi 0, %s88
      %s106 = sphi 0, %s106
      %s108 = sphi 0, %s106
      %s109 = sphi 0, %s108
      %s123 = sphi 0, %s109
      %s127 = sphi 0, %s127
      %s129 = sphi 0, %s127
      %s130 = sphi 0, %s129
      %s144 = sphi 0, %s130
      %s148 = sphi 0, %s148
      %s150 = sphi 0, %s148
      %s151 = sphi 0, %s150
      %s165 = sphi 0, %s151
      %s169 = sphi 0, %s169
      %s171 = sphi 0, %s169
      %s172 = sphi 0, %s171
      %s186 = sphi 0, %s172
      %s190 = sphi 0, %s190
      %s192 = sphi 0, %s190
      %s193 = sphi 0, %s192
      %s207 = sphi 0, %s193
      %s211 = sphi 0, %s211
      %s213 = sphi 0, %s211
      %s214 = sphi 0, %s213
      %s228 = sphi 0, %s214
      %s232 = sphi 0, %s232
      %s234 = sphi 0, %s232
      %s235 = sphi 0, %s234
      %s249 = sphi 0, %s235
      %s253 = sphi 0, %s253
      %s255 = sphi 0, %s253
      %s256 = sphi 0, %s255
      %s270 = sphi 0, %s256
      %s274 = sphi 0, %s274
      %s276 = sphi 0, %s274
      %s277 = sphi 0, %s276
      %s291 = sphi 0, %s277
      %s295 = sphi 0, %s295
      %s297 = sphi 0, %s295
      %s298 = sphi 0, %s297
      %s312 = sphi 0, %s298
      %s316 = sphi 0, %s316
      %s318 = sphi 0, %s316
      %s319 = sphi 0, %s318
      %s333 = sphi 0, %s319
      %s337 = sphi 0, %s337
      %s339 = sphi 0, %s337
      %s340 = sphi 0, %s339
      %s354 = sphi 0, %s340
      %s358 = sphi 0, %s358
      %s360 = sphi 0, %s358
      %s361 = sphi 0, %s360
      %s375 = sphi 0, %s361
      %s379 = sphi 0, %s379
      %s381 = sphi 0, %s379
      %s382 = sphi 0, %s381
      %s396 = sphi 0, %s382
      %s400 = sphi 0, %s400
      %s402 = sphi 0, %s400
      %s403 = sphi 0, %s402
      %s417 = sphi 0, %s403
      %s421 = sphi 0, %s421
      %s423 = sphi 0, %s421
      %s424 = sphi 0, %s423
      %s438 = sphi 0, %s424
      %s444 = sphi 0, %s446
      %s447 = sphi 0, %s444
      %s448 = sphi 0, %s447
      %s464 = sphi 0, %s448
      %s470 = sphi 0, %s472
      %s473 = sphi 0, %s470
      %s474 = sphi 0, %s473
      %s490 = sphi 0, %s474
    $region4: #{forward.1} parent=1 // loop_header_branch
      %33 = sbr.rel (%p31) target = $region8
    $region5: #{forward.1} parent=1 // loop_body
      %s35 = ssub.s32 %s30, 1
      %s36 = ssub.s32 %s30, 2
      %s37 = sadd.s32 %s30, 1
      %s38 = ssub.s32 %s30, %s37
      %p39 = scmp.eq.s32.totalorder %s38, 0
      %s41 = sadd.s32 %s40, 1
      %s42 = scalar_select %p39, %s40, %s41
      %p45 = pneg %p39
      %p46 = scmp.eq.s32.totalorder %s30, 1
      %p47 = por %p45, %p46
      %p48 = scmp.ne.s32.totalorder %s40, %s43
      %p49 = scmp.eq.s32.totalorder %s30, 0
      %p50 = por %p48, %p49
      %p51 = scmp.ne.s32.totalorder %s40, %s43
      %p52 = scmp.eq.s32.totalorder %s35, 1
      %p53 = por %p51, %p52
      %p54 = scmp.ne.s32.totalorder %s43, %s44
      %p55 = scmp.eq.s32.totalorder %s35, 0
      %p56 = por %p54, %p55
      %p57 = scmp.ne.s32.totalorder %s43, %s44
      %p58 = scmp.eq.s32.totalorder %s36, 1
      %p59 = por %p57, %p58
      %p61 = scmp.ne.s32.totalorder %s44, %s60
      %p62 = scmp.eq.s32.totalorder %s36, 0
      %p63 = por %p61, %p62
      %s65 = sadd.s32 %s64, 1
      %p68 = scmp.eq.s32.totalorder %s30, 1
      %p69 = scmp.ne.s32.totalorder %s64, %s66
      %p70 = scmp.eq.s32.totalorder %s30, 0
      %p71 = por %p69, %p70
      %p72 = scmp.ne.s32.totalorder %s64, %s66
      %p73 = scmp.eq.s32.totalorder %s35, 1
      %p74 = por %p72, %p73
      %p75 = scmp.ne.s32.totalorder %s66, %s67
      %p76 = scmp.eq.s32.totalorder %s35, 0
      %p77 = por %p75, %p76
      %p78 = scmp.ne.s32.totalorder %s66, %s67
      %p79 = scmp.eq.s32.totalorder %s36, 1
      %p80 = por %p78, %p79
      %p82 = scmp.ne.s32.totalorder %s67, %s81
      %p83 = scmp.eq.s32.totalorder %s36, 0
      %p84 = por %p82, %p83
      %s86 = sadd.s32 %s85, 1
      %p89 = scmp.eq.s32.totalorder %s30, 1
      %p90 = scmp.ne.s32.totalorder %s85, %s87
      %p91 = scmp.eq.s32.totalorder %s30, 0
      %p92 = por %p90, %p91
      %p93 = scmp.ne.s32.totalorder %s85, %s87
      %p94 = scmp.eq.s32.totalorder %s35, 1
      %p95 = por %p93, %p94
      %p96 = scmp.ne.s32.totalorder %s87, %s88
      %p97 = scmp.eq.s32.totalorder %s35, 0
      %p98 = por %p96, %p97
      %p99 = scmp.ne.s32.totalorder %s87, %s88
      %p100 = scmp.eq.s32.totalorder %s36, 1
      %p101 = por %p99, %p100
      %p103 = scmp.ne.s32.totalorder %s88, %s102
      %p104 = scmp.eq.s32.totalorder %s36, 0
      %p105 = por %p103, %p104
      %s107 = sadd.s32 %s106, 1
      %p110 = scmp.eq.s32.totalorder %s30, 1
      %p111 = scmp.ne.s32.totalorder %s106, %s108
      %p112 = scmp.eq.s32.totalorder %s30, 0
      %p113 = por %p111, %p112
      %p114 = scmp.ne.s32.totalorder %s106, %s108
      %p115 = scmp.eq.s32.totalorder %s35, 1
      %p116 = por %p114, %p115
      %p117 = scmp.ne.s32.totalorder %s108, %s109
      %p118 = scmp.eq.s32.totalorder %s35, 0
      %p119 = por %p117, %p118
      %p120 = scmp.ne.s32.totalorder %s108, %s109
      %p121 = scmp.eq.s32.totalorder %s36, 1
      %p122 = por %p120, %p121
      %p124 = scmp.ne.s32.totalorder %s109, %s123
      %p125 = scmp.eq.s32.totalorder %s36, 0
      %p126 = por %p124, %p125
      %s128 = sadd.s32 %s127, 1
      %p131 = scmp.eq.s32.totalorder %s30, 1
      %p132 = scmp.ne.s32.totalorder %s127, %s129
      %p133 = scmp.eq.s32.totalorder %s30, 0
      %p134 = por %p132, %p133
      %p135 = scmp.ne.s32.totalorder %s127, %s129
      %p136 = scmp.eq.s32.totalorder %s35, 1
      %p137 = por %p135, %p136
      %p138 = scmp.ne.s32.totalorder %s129, %s130
      %p139 = scmp.eq.s32.totalorder %s35, 0
      %p140 = por %p138, %p139
      %p141 = scmp.ne.s32.totalorder %s129, %s130
      %p142 = scmp.eq.s32.totalorder %s36, 1
      %p143 = por %p141, %p142
      %p145 = scmp.ne.s32.totalorder %s130, %s144
      %p146 = scmp.eq.s32.totalorder %s36, 0
      %p147 = por %p145, %p146
      %s149 = sadd.s32 %s148, 1
      %p152 = scmp.eq.s32.totalorder %s30, 1
      %p153 = scmp.ne.s32.totalorder %s148, %s150
      %p154 = scmp.eq.s32.totalorder %s30, 0
      %p155 = por %p153, %p154
      %p156 = scmp.ne.s32.totalorder %s148, %s150
      %p157 = scmp.eq.s32.totalorder %s35, 1
      %p158 = por %p156, %p157
      %p159 = scmp.ne.s32.totalorder %s150, %s151
      %p160 = scmp.eq.s32.totalorder %s35, 0
      %p161 = por %p159, %p160
      %p162 = scmp.ne.s32.totalorder %s150, %s151
      %p163 = scmp.eq.s32.totalorder %s36, 1
      %p164 = por %p162, %p163
      %p166 = scmp.ne.s32.totalorder %s151, %s165
      %p167 = scmp.eq.s32.totalorder %s36, 0
      %p168 = por %p166, %p167
      %s170 = sadd.s32 %s169, 1
      %p173 = scmp.eq.s32.totalorder %s30, 1
      %p174 = scmp.ne.s32.totalorder %s169, %s171
      %p175 = scmp.eq.s32.totalorder %s30, 0
      %p176 = por %p174, %p175
      %p177 = scmp.ne.s32.totalorder %s169, %s171
      %p178 = scmp.eq.s32.totalorder %s35, 1
      %p179 = por %p177, %p178
      %p180 = scmp.ne.s32.totalorder %s171, %s172
      %p181 = scmp.eq.s32.totalorder %s35, 0
      %p182 = por %p180, %p181
      %p183 = scmp.ne.s32.totalorder %s171, %s172
      %p184 = scmp.eq.s32.totalorder %s36, 1
      %p185 = por %p183, %p184
      %p187 = scmp.ne.s32.totalorder %s172, %s186
      %p188 = scmp.eq.s32.totalorder %s36, 0
      %p189 = por %p187, %p188
      %s191 = sadd.s32 %s190, 1
      %p194 = scmp.eq.s32.totalorder %s30, 1
      %p195 = scmp.ne.s32.totalorder %s190, %s192
      %p196 = scmp.eq.s32.totalorder %s30, 0
      %p197 = por %p195, %p196
      %p198 = scmp.ne.s32.totalorder %s190, %s192
      %p199 = scmp.eq.s32.totalorder %s35, 1
      %p200 = por %p198, %p199
      %p201 = scmp.ne.s32.totalorder %s192, %s193
      %p202 = scmp.eq.s32.totalorder %s35, 0
      %p203 = por %p201, %p202
      %p204 = scmp.ne.s32.totalorder %s192, %s193
      %p205 = scmp.eq.s32.totalorder %s36, 1
      %p206 = por %p204, %p205
      %p208 = scmp.ne.s32.totalorder %s193, %s207
      %p209 = scmp.eq.s32.totalorder %s36, 0
      %p210 = por %p208, %p209
      %s212 = sadd.s32 %s211, 1
      %p215 = scmp.eq.s32.totalorder %s30, 1
      %p216 = scmp.ne.s32.totalorder %s211, %s213
      %p217 = scmp.eq.s32.totalorder %s30, 0
      %p218 = por %p216, %p217
      %p219 = scmp.ne.s32.totalorder %s211, %s213
      %p220 = scmp.eq.s32.totalorder %s35, 1
      %p221 = por %p219, %p220
      %p222 = scmp.ne.s32.totalorder %s213, %s214
      %p223 = scmp.eq.s32.totalorder %s35, 0
      %p224 = por %p222, %p223
      %p225 = scmp.ne.s32.totalorder %s213, %s214
      %p226 = scmp.eq.s32.totalorder %s36, 1
      %p227 = por %p225, %p226
      %p229 = scmp.ne.s32.totalorder %s214, %s228
      %p230 = scmp.eq.s32.totalorder %s36, 0
      %p231 = por %p229, %p230
      %s233 = sadd.s32 %s232, 1
      %p236 = scmp.eq.s32.totalorder %s30, 1
      %p237 = scmp.ne.s32.totalorder %s232, %s234
      %p238 = scmp.eq.s32.totalorder %s30, 0
      %p239 = por %p237, %p238
      %p240 = scmp.ne.s32.totalorder %s232, %s234
      %p241 = scmp.eq.s32.totalorder %s35, 1
      %p242 = por %p240, %p241
      %p243 = scmp.ne.s32.totalorder %s234, %s235
      %p244 = scmp.eq.s32.totalorder %s35, 0
      %p245 = por %p243, %p244
      %p246 = scmp.ne.s32.totalorder %s234, %s235
      %p247 = scmp.eq.s32.totalorder %s36, 1
      %p248 = por %p246, %p247
      %p250 = scmp.ne.s32.totalorder %s235, %s249
      %p251 = scmp.eq.s32.totalorder %s36, 0
      %p252 = por %p250, %p251
      %s254 = sadd.s32 %s253, 1
      %p257 = scmp.eq.s32.totalorder %s30, 1
      %p258 = scmp.ne.s32.totalorder %s253, %s255
      %p259 = scmp.eq.s32.totalorder %s30, 0
      %p260 = por %p258, %p259
      %p261 = scmp.ne.s32.totalorder %s253, %s255
      %p262 = scmp.eq.s32.totalorder %s35, 1
      %p263 = por %p261, %p262
      %p264 = scmp.ne.s32.totalorder %s255, %s256
      %p265 = scmp.eq.s32.totalorder %s35, 0
      %p266 = por %p264, %p265
      %p267 = scmp.ne.s32.totalorder %s255, %s256
      %p268 = scmp.eq.s32.totalorder %s36, 1
      %p269 = por %p267, %p268
      %p271 = scmp.ne.s32.totalorder %s256, %s270
      %p272 = scmp.eq.s32.totalorder %s36, 0
      %p273 = por %p271, %p272
      %s275 = sadd.s32 %s274, 1
      %p278 = scmp.eq.s32.totalorder %s30, 1
      %p279 = scmp.ne.s32.totalorder %s274, %s276
      %p280 = scmp.eq.s32.totalorder %s30, 0
      %p281 = por %p279, %p280
      %p282 = scmp.ne.s32.totalorder %s274, %s276
      %p283 = scmp.eq.s32.totalorder %s35, 1
      %p284 = por %p282, %p283
      %p285 = scmp.ne.s32.totalorder %s276, %s277
      %p286 = scmp.eq.s32.totalorder %s35, 0
      %p287 = por %p285, %p286
      %p288 = scmp.ne.s32.totalorder %s276, %s277
      %p289 = scmp.eq.s32.totalorder %s36, 1
      %p290 = por %p288, %p289
      %p292 = scmp.ne.s32.totalorder %s277, %s291
      %p293 = scmp.eq.s32.totalorder %s36, 0
      %p294 = por %p292, %p293
      %s296 = sadd.s32 %s295, 1
      %p299 = scmp.eq.s32.totalorder %s30, 1
      %p300 = scmp.ne.s32.totalorder %s295, %s297
      %p301 = scmp.eq.s32.totalorder %s30, 0
      %p302 = por %p300, %p301
      %p303 = scmp.ne.s32.totalorder %s295, %s297
      %p304 = scmp.eq.s32.totalorder %s35, 1
      %p305 = por %p303, %p304
      %p306 = scmp.ne.s32.totalorder %s297, %s298
      %p307 = scmp.eq.s32.totalorder %s35, 0
      %p308 = por %p306, %p307
      %p309 = scmp.ne.s32.totalorder %s297, %s298
      %p310 = scmp.eq.s32.totalorder %s36, 1
      %p311 = por %p309, %p310
      %p313 = scmp.ne.s32.totalorder %s298, %s312
      %p314 = scmp.eq.s32.totalorder %s36, 0
      %p315 = por %p313, %p314
      %s317 = sadd.s32 %s316, 1
      %p320 = scmp.eq.s32.totalorder %s30, 1
      %p321 = scmp.ne.s32.totalorder %s316, %s318
      %p322 = scmp.eq.s32.totalorder %s30, 0
      %p323 = por %p321, %p322
      %p324 = scmp.ne.s32.totalorder %s316, %s318
      %p325 = scmp.eq.s32.totalorder %s35, 1
      %p326 = por %p324, %p325
      %p327 = scmp.ne.s32.totalorder %s318, %s319
      %p328 = scmp.eq.s32.totalorder %s35, 0
      %p329 = por %p327, %p328
      %p330 = scmp.ne.s32.totalorder %s318, %s319
      %p331 = scmp.eq.s32.totalorder %s36, 1
      %p332 = por %p330, %p331
      %p334 = scmp.ne.s32.totalorder %s319, %s333
      %p335 = scmp.eq.s32.totalorder %s36, 0
      %p336 = por %p334, %p335
      %s338 = sadd.s32 %s337, 1
      %p341 = scmp.eq.s32.totalorder %s30, 1
      %p342 = scmp.ne.s32.totalorder %s337, %s339
      %p343 = scmp.eq.s32.totalorder %s30, 0
      %p344 = por %p342, %p343
      %p345 = scmp.ne.s32.totalorder %s337, %s339
      %p346 = scmp.eq.s32.totalorder %s35, 1
      %p347 = por %p345, %p346
      %p348 = scmp.ne.s32.totalorder %s339, %s340
      %p349 = scmp.eq.s32.totalorder %s35, 0
      %p350 = por %p348, %p349
      %p351 = scmp.ne.s32.totalorder %s339, %s340
      %p352 = scmp.eq.s32.totalorder %s36, 1
      %p353 = por %p351, %p352
      %p355 = scmp.ne.s32.totalorder %s340, %s354
      %p356 = scmp.eq.s32.totalorder %s36, 0
      %p357 = por %p355, %p356
      %s359 = sadd.s32 %s358, 1
      %p362 = scmp.eq.s32.totalorder %s30, 1
      %p363 = scmp.ne.s32.totalorder %s358, %s360
      %p364 = scmp.eq.s32.totalorder %s30, 0
      %p365 = por %p363, %p364
      %p366 = scmp.ne.s32.totalorder %s358, %s360
      %p367 = scmp.eq.s32.totalorder %s35, 1
      %p368 = por %p366, %p367
      %p369 = scmp.ne.s32.totalorder %s360, %s361
      %p370 = scmp.eq.s32.totalorder %s35, 0
      %p371 = por %p369, %p370
      %p372 = scmp.ne.s32.totalorder %s360, %s361
      %p373 = scmp.eq.s32.totalorder %s36, 1
      %p374 = por %p372, %p373
      %p376 = scmp.ne.s32.totalorder %s361, %s375
      %p377 = scmp.eq.s32.totalorder %s36, 0
      %p378 = por %p376, %p377
      %s380 = sadd.s32 %s379, 1
      %p383 = scmp.eq.s32.totalorder %s30, 1
      %p384 = scmp.ne.s32.totalorder %s379, %s381
      %p385 = scmp.eq.s32.totalorder %s30, 0
      %p386 = por %p384, %p385
      %p387 = scmp.ne.s32.totalorder %s379, %s381
      %p388 = scmp.eq.s32.totalorder %s35, 1
      %p389 = por %p387, %p388
      %p390 = scmp.ne.s32.totalorder %s381, %s382
      %p391 = scmp.eq.s32.totalorder %s35, 0
      %p392 = por %p390, %p391
      %p393 = scmp.ne.s32.totalorder %s381, %s382
      %p394 = scmp.eq.s32.totalorder %s36, 1
      %p395 = por %p393, %p394
      %p397 = scmp.ne.s32.totalorder %s382, %s396
      %p398 = scmp.eq.s32.totalorder %s36, 0
      %p399 = por %p397, %p398
      %s401 = sadd.s32 %s400, 1
      %p404 = scmp.eq.s32.totalorder %s30, 1
      %p405 = scmp.ne.s32.totalorder %s400, %s402
      %p406 = scmp.eq.s32.totalorder %s30, 0
      %p407 = por %p405, %p406
      %p408 = scmp.ne.s32.totalorder %s400, %s402
      %p409 = scmp.eq.s32.totalorder %s35, 1
      %p410 = por %p408, %p409
      %p411 = scmp.ne.s32.totalorder %s402, %s403
      %p412 = scmp.eq.s32.totalorder %s35, 0
      %p413 = por %p411, %p412
      %p414 = scmp.ne.s32.totalorder %s402, %s403
      %p415 = scmp.eq.s32.totalorder %s36, 1
      %p416 = por %p414, %p415
      %p418 = scmp.ne.s32.totalorder %s403, %s417
      %p419 = scmp.eq.s32.totalorder %s36, 0
      %p420 = por %p418, %p419
      %s422 = sadd.s32 %s421, 1
      %p425 = scmp.eq.s32.totalorder %s30, 1
      %p426 = scmp.ne.s32.totalorder %s421, %s423
      %p427 = scmp.eq.s32.totalorder %s30, 0
      %p428 = por %p426, %p427
      %p429 = scmp.ne.s32.totalorder %s421, %s423
      %p430 = scmp.eq.s32.totalorder %s35, 1
      %p431 = por %p429, %p430
      %p432 = scmp.ne.s32.totalorder %s423, %s424
      %p433 = scmp.eq.s32.totalorder %s35, 0
      %p434 = por %p432, %p433
      %p435 = scmp.ne.s32.totalorder %s423, %s424
      %p436 = scmp.eq.s32.totalorder %s36, 1
      %p437 = por %p435, %p436
      %p439 = scmp.ne.s32.totalorder %s424, %s438
      %p440 = scmp.eq.s32.totalorder %s36, 0
      %p441 = por %p439, %p440
      %s442 = ssub.s32 %s30, %s37
      %p443 = scmp.eq.s32.totalorder %s442, 0
      %s445 = sadd.s32 %s444, 1
      %s446 = scalar_select %p443, %s444, %s445
      %p449 = pneg %p443
      %p450 = scmp.eq.s32.totalorder %s30, 1
      %p451 = por %p449, %p450
      %p452 = scmp.ne.s32.totalorder %s444, %s447
      %p453 = scmp.eq.s32.totalorder %s30, 0
      %p454 = por %p452, %p453
      %p455 = scmp.ne.s32.totalorder %s444, %s447
      %p456 = scmp.eq.s32.totalorder %s35, 1
      %p457 = por %p455, %p456
      %p458 = scmp.ne.s32.totalorder %s447, %s448
      %p459 = scmp.eq.s32.totalorder %s35, 0
      %p460 = por %p458, %p459
      %p461 = scmp.ne.s32.totalorder %s447, %s448
      %p462 = scmp.eq.s32.totalorder %s36, 1
      %p463 = por %p461, %p462
      %p465 = scmp.ne.s32.totalorder %s448, %s464
      %p466 = scmp.eq.s32.totalorder %s36, 0
      %p467 = por %p465, %p466
      %s468 = ssub.s32 %s30, %s37
      %p469 = scmp.eq.s32.totalorder %s468, 0
      %s471 = sadd.s32 %s470, 1
      %s472 = scalar_select %p469, %s470, %s471
      %p475 = pneg %p469
      %p476 = scmp.eq.s32.totalorder %s30, 1
      %p477 = por %p475, %p476
      %p478 = scmp.ne.s32.totalorder %s470, %s473
      %p479 = scmp.eq.s32.totalorder %s30, 0
      %p480 = por %p478, %p479
      %p481 = scmp.ne.s32.totalorder %s470, %s473
      %p482 = scmp.eq.s32.totalorder %s35, 1
      %p483 = por %p481, %p482
      %p484 = scmp.ne.s32.totalorder %s473, %s474
      %p485 = scmp.eq.s32.totalorder %s35, 0
      %p486 = por %p484, %p485
      %p487 = scmp.ne.s32.totalorder %s473, %s474
      %p488 = scmp.eq.s32.totalorder %s36, 1
      %p489 = por %p487, %p488
      %p491 = scmp.ne.s32.totalorder %s474, %s490
      %p492 = scmp.eq.s32.totalorder %s36, 0
      %p493 = por %p491, %p492
      %p494 = scmp.le.s32.totalorder 1, %s30
      %p495 = scmp.lt.s32.totalorder %s30, 3
      %p496 = pnand %p494, %p495
      %p497 = pneg %p496
      // Predicated region
      $region9: #{forward.1} parent=5 // pred_check
        _
      $region10: #{forward.1} parent=5 // pred_check_branch
        %499 = sbr.rel (%p496) target = $region12
      $region11: #{forward.1} parent=5 // pred_region
        %s500 = ssub.s32 %s30, 1
        // Predicated region
        $region13: #{forward.1} parent=11 // pred_check
          %p501 = pneg %p77
        $region14: #{forward.1} parent=11 // pred_check_branch
          %503 = sbr.rel (%p501) target = $region16
        $region15: #{forward.1} parent=11 // pred_region
          _
        $region16: #{forward.1} parent=11 // pred_fallthru
          _
        // Predicated region
        $region17: #{forward.1} parent=11 // pred_check
          %p504 = pneg %p98
        $region18: #{forward.1} parent=11 // pred_check_branch
          %506 = sbr.rel (%p504) target = $region20
        $region19: #{forward.1} parent=11 // pred_region
          _
        $region20: #{forward.1} parent=11 // pred_fallthru
          _
        // Predicated region
        $region21: #{forward.1} parent=11 // pred_check
          %p507 = pneg %p119
        $region22: #{forward.1} parent=11 // pred_check_branch
          %509 = sbr.rel (%p507) target = $region24
        $region23: #{forward.1} parent=11 // pred_region
          _
        $region24: #{forward.1} parent=11 // pred_fallthru
          _
        // Predicated region
        $region25: #{forward.1} parent=11 // pred_check
          %p510 = pneg %p140
        $region26: #{forward.1} parent=11 // pred_check_branch
          %512 = sbr.rel (%p510) target = $region28
        $region27: #{forward.1} parent=11 // pred_region
          _
        $region28: #{forward.1} parent=11 // pred_fallthru
          _
        // Predicated region
        $region29: #{forward.1} parent=11 // pred_check
          %p513 = pneg %p161
        $region30: #{forward.1} parent=11 // pred_check_branch
          %515 = sbr.rel (%p513) target = $region32
        $region31: #{forward.1} parent=11 // pred_region
          _
        $region32: #{forward.1} parent=11 // pred_fallthru
          _
        // Predicated region
        $region33: #{forward.1} parent=11 // pred_check
          %p516 = pneg %p182
        $region34: #{forward.1} parent=11 // pred_check_branch
          %518 = sbr.rel (%p516) target = $region36
        $region35: #{forward.1} parent=11 // pred_region
          _
        $region36: #{forward.1} parent=11 // pred_fallthru
          _
        // Predicated region
        $region37: #{forward.1} parent=11 // pred_check
          %p519 = pneg %p203
        $region38: #{forward.1} parent=11 // pred_check_branch
          %521 = sbr.rel (%p519) target = $region40
        $region39: #{forward.1} parent=11 // pred_region
          _
        $region40: #{forward.1} parent=11 // pred_fallthru
          _
        // Predicated region
        $region41: #{forward.1} parent=11 // pred_check
          %p522 = pneg %p224
        $region42: #{forward.1} parent=11 // pred_check_branch
          %524 = sbr.rel (%p522) target = $region44
        $region43: #{forward.1} parent=11 // pred_region
          _
        $region44: #{forward.1} parent=11 // pred_fallthru
          _
        // Predicated region
        $region45: #{forward.1} parent=11 // pred_check
          %p525 = pneg %p245
        $region46: #{forward.1} parent=11 // pred_check_branch
          %527 = sbr.rel (%p525) target = $region48
        $region47: #{forward.1} parent=11 // pred_region
          _
        $region48: #{forward.1} parent=11 // pred_fallthru
          _
        // Predicated region
        $region49: #{forward.1} parent=11 // pred_check
          %p528 = pneg %p266
        $region50: #{forward.1} parent=11 // pred_check_branch
          %530 = sbr.rel (%p528) target = $region52
        $region51: #{forward.1} parent=11 // pred_region
          _
        $region52: #{forward.1} parent=11 // pred_fallthru
          _
        // Predicated region
        $region53: #{forward.1} parent=11 // pred_check
          %p531 = pneg %p287
        $region54: #{forward.1} parent=11 // pred_check_branch
          %533 = sbr.rel (%p531) target = $region56
        $region55: #{forward.1} parent=11 // pred_region
          _
        $region56: #{forward.1} parent=11 // pred_fallthru
          _
        // Predicated region
        $region57: #{forward.1} parent=11 // pred_check
          %p534 = pneg %p308
        $region58: #{forward.1} parent=11 // pred_check_branch
          %536 = sbr.rel (%p534) target = $region60
        $region59: #{forward.1} parent=11 // pred_region
          _
        $region60: #{forward.1} parent=11 // pred_fallthru
          _
        // Predicated region
        $region61: #{forward.1} parent=11 // pred_check
          %p537 = pneg %p329
        $region62: #{forward.1} parent=11 // pred_check_branch
          %539 = sbr.rel (%p537) target = $region64
        $region63: #{forward.1} parent=11 // pred_region
          _
        $region64: #{forward.1} parent=11 // pred_fallthru
          _
        // Predicated region
        $region65: #{forward.1} parent=11 // pred_check
          %p540 = pneg %p350
        $region66: #{forward.1} parent=11 // pred_check_branch
          %542 = sbr.rel (%p540) target = $region68
        $region67: #{forward.1} parent=11 // pred_region
          _
        $region68: #{forward.1} parent=11 // pred_fallthru
          _
        // Predicated region
        $region69: #{forward.1} parent=11 // pred_check
          %p543 = pneg %p371
        $region70: #{forward.1} parent=11 // pred_check_branch
          %545 = sbr.rel (%p543) target = $region72
        $region71: #{forward.1} parent=11 // pred_region
          _
        $region72: #{forward.1} parent=11 // pred_fallthru
          _
        // Predicated region
        $region73: #{forward.1} parent=11 // pred_check
          %p546 = pneg %p392
        $region74: #{forward.1} parent=11 // pred_check_branch
          %548 = sbr.rel (%p546) target = $region76
        $region75: #{forward.1} parent=11 // pred_region
          _
        $region76: #{forward.1} parent=11 // pred_fallthru
          _
        // Predicated region
        $region77: #{forward.1} parent=11 // pred_check
          %p549 = pneg %p413
        $region78: #{forward.1} parent=11 // pred_check_branch
          %551 = sbr.rel (%p549) target = $region80
        $region79: #{forward.1} parent=11 // pred_region
          _
        $region80: #{forward.1} parent=11 // pred_fallthru
          _
        // Predicated region
        $region81: #{forward.1} parent=11 // pred_check
          %p552 = pneg %p434
        $region82: #{forward.1} parent=11 // pred_check_branch
          %554 = sbr.rel (%p552) target = $region84
        $region83: #{forward.1} parent=11 // pred_region
          _
        $region84: #{forward.1} parent=11 // pred_fallthru
          _
      $region12: #{forward.1} parent=5 // pred_fallthru
        _
      %p555 = scmp.lt.s32.totalorder %s30, 2
      // Predicated region
      $region85: #{forward.1} parent=5 // pred_check
        %p556 = pneg %p555
      $region86: #{forward.1} parent=5 // pred_check_branch
        %558 = sbr.rel (%p556) target = $region88
      $region87: #{forward.1} parent=5 // pred_region
        // Predicated region
        $region89: #{forward.1} parent=87 // pred_check
          %p559 = pneg %p50
        $region90: #{forward.1} parent=87 // pred_check_branch
          %561 = sbr.rel (%p559) target = $region92
        $region91: #{forward.1} parent=87 // pred_region
          %p562 = scmp.lt.s32.totalorder %s30, 1
          %s563 = scalar_select %p562, %s30, 1
          %s564 = smul.addr %s563, 2
          %s565 = smul.addr %s564, 8
          %s566 = scalar_lea.vmem %s0, %s565
        $region92: #{forward.1} parent=87 // pred_fallthru
          _
      $region88: #{forward.1} parent=5 // pred_fallthru
        _
      %p567 = scmp.le.s32.totalorder 1, %s30
      %p568 = scmp.lt.s32.totalorder %s30, 3
      %p569 = pnand %p567, %p568
      %p570 = pneg %p569
      // Predicated region
      $region93: #{forward.1} parent=5 // pred_check
        _
      $region94: #{forward.1} parent=5 // pred_check_branch
        %572 = sbr.rel (%p569) target = $region96
      $region95: #{forward.1} parent=5 // pred_region
        %s573 = ssub.s32 %s30, 1
        %p574 = scmp.lt.s32.totalorder %s35, 1
        %s575 = scalar_select %p574, %s35, 1
        %s576 = smul.addr %s575, 2
        %s577 = smul.addr %s576, 8
        %s578 = scalar_lea.vmem %s0, %s577
        %p579 = pneg %p56
        %p580 = pneg %p53
        %p581 = pneg %p77
        %p582 = pneg %p74
        %p583 = pneg %p98
        %p584 = pneg %p95
        %p585 = pneg %p119
        %p586 = pneg %p116
        %p587 = pneg %p140
        %p588 = pneg %p137
        %p589 = pneg %p161
        %p590 = pneg %p158
        %p591 = pneg %p182
        %p592 = pneg %p179
        %p593 = pneg %p203
        %p594 = pneg %p200
        %p595 = pneg %p224
        %p596 = pneg %p221
        %p597 = pneg %p245
        %p598 = pneg %p242
        %p599 = pneg %p266
        %p600 = pneg %p263
        %p601 = pneg %p287
        %p602 = pneg %p284
        %p603 = pneg %p308
        %p604 = pneg %p305
        %p605 = pneg %p329
        %p606 = pneg %p326
        %p607 = pneg %p350
        %p608 = pneg %p347
        %p609 = pneg %p371
        %p610 = pneg %p368
        %p611 = pneg %p392
        %p612 = pneg %p389
        %p613 = pneg %p413
        %p614 = pneg %p410
        %p615 = pneg %p434
        %p616 = pneg %p431
        %p617 = pneg %p460
        %p618 = pneg %p457
        %p619 = scmp.lt.s32.totalorder %s35, 1
        %s620 = scalar_select %p619, %s35, 1
        %s621 = smul.addr %s620, 2
        %s622 = smul.addr %s621, 8
        %s623 = scalar_lea.vmem %s19, %s622
        %p624 = pneg %p486
        %p625 = pneg %p483
        %s626 = sand.u32 %s473, 1
        %s627 = scalar_lea.sflag [#allocation3], %s626
        %s628 = sand.u32 %s473, 1
        %s629 = scalar_lea.vmem [#allocation2], %s628
        %p630 = scmp.lt.s32.totalorder %s35, 1
        %s631 = scalar_select %p630, %s35, 1
        %s632 = smul.addr %s631, 2
        %s633 = smul.addr %s632, 8
        %s634 = scalar_lea.vmem %s0, %s633
        %p635 = scmp.lt.s32.totalorder %s35, 1
        %s636 = scalar_select %p635, %s35, 1
        %s637 = smul.addr %s636, 2
        %s638 = smul.addr %s637, 8
        %s639 = scalar_lea.vmem %s19, %s638
        %v641 = vld [vmem:[%s634] sm:$0xff]
        %v642 = vld [vmem:[%s634 + $0x8] sm:$0x1]
        %v643 = vld [vmem:[%s1] sm:$0x1]
        %v644 = vld [vmem:[%s2] sm:$0x1]
        %vm645 = vcmask 818176
        %v646 = vsel %vm645, %v641, 0.0
        %647 = vadd.xlane.f32.xlu0 %v646
        %v648 = vpop.xlane.xlu0 %647
        %vm649 = vcmask 811008
        %v650 = vsel %vm649, %v642, 0.0
        %651 = vadd.xlane.f32.xlu0 %v650
        %v652 = vpop.xlane.xlu0 %651
        %v653 = vrcp.pop 100.0
        %v654 = vmul.f32 100.0, %v653
        %v655 = vsub.f32 1.0, %v654
        %v656 = vmul.f32 %v653, %v655
        %v657 = vadd.f32 %v653, %v656
        %vm658 = vweird.f32 %v653
        %v659 = vsel %vm658, %v653, %v657
        %v660 = vmul.f32 %v648, %v659
        %v661 = vmul.f32 %v652, %v659
        %v662 = vsub.f32 %v641, %v660
        %v663 = vsub.f32 %v642, %v661
        %v664 = vmul.f32 %v662, %v662
        %v665 = vmul.f32 %v663, %v663
        %v666 = vsel %vm645, %v664, 0.0
        %667 = vadd.xlane.f32.xlu0 %v666
        %v668 = vpop.xlane.xlu0 %667
        %v669 = vsel %vm649, %v665, 0.0
        %670 = vadd.xlane.f32.xlu0 %v669
        %v671 = vpop.xlane.xlu0 %670
        %v672 = vrcp.pop 99.0
        %v673 = vmul.f32 99.0, %v672
        %v674 = vsub.f32 1.0, %v673
        %v675 = vmul.f32 %v672, %v674
        %v676 = vadd.f32 %v672, %v675
        %vm677 = vweird.f32 %v672
        %v678 = vsel %vm677, %v672, %v676
        %v679 = vmul.f32 %v668, %v678
        %v680 = vmul.f32 %v671, %v678
        %v682 = vperm.slane %v643, 0
        %v684 = vmul.f32 %v682, %v662
        %v685 = vmul.f32 %v682, %v663
        %v686 = vrsqrt.pop %v679
        %v687 = vmul.f32 %v686, %v679
        %v688 = vmul.f32 %v687, %v686
        %v689 = vmul.f32 0.5, %v688
        %v690 = vsub.f32 1.5, %v689
        %v691 = vmul.f32 %v686, %v690
        %v692 = vmul.f32 %v679, %v691
        %vm693 = vcmp.eq.f32.partialorder %v679, inf
        %v694 = vsel %vm693, %v679, %v692
        %vm695 = vcmp.eq.f32.partialorder %v679, 0.0
        %v696 = vand.u32 %v679, 2147483648
        %v697 = vsel %vm695, %v696, %v694
        %v698 = vrsqrt.pop %v680
        %v699 = vmul.f32 %v698, %v680
        %v700 = vmul.f32 %v699, %v698
        %v701 = vmul.f32 0.5, %v700
        %v702 = vsub.f32 1.5, %v701
        %v703 = vmul.f32 %v698, %v702
        %v704 = vmul.f32 %v680, %v703
        %vm705 = vcmp.eq.f32.partialorder %v680, inf
        %v706 = vsel %vm705, %v680, %v704
        %vm707 = vcmp.eq.f32.partialorder %v680, 0.0
        %v708 = vand.u32 %v680, 2147483648
        %v709 = vsel %vm707, %v708, %v706
        %v710 = vadd.f32 %v697, 1e-06
        %v711 = vadd.f32 %v709, 1e-06
        %v712 = vrcp.pop %v710
        %v713 = vmul.f32 %v710, %v712
        %v714 = vsub.f32 1.0, %v713
        %v715 = vmul.f32 %v712, %v714
        %v716 = vadd.f32 %v712, %v715
        %vm717 = vweird.f32 %v710
        %vm718 = vweird.f32 %v712
        %vm719 = vmor %vm717, %vm718
        %v720 = vsel %vm719, %v712, %v716
        %v721 = vand.u32 2147483647, %v710
        %vm722 = vcmp.eq.f32.partialorder %v721, 8.507059e+37
        %v723 = vand.u32 %v710, 2147483648
        %v724 = vor.u32 1.1754944e-38, %v723
        %v725 = vsel %vm722, %v724, %v720
        %v726 = vmul.f32 %v684, %v725
        %v727 = vrcp.pop %v711
        %v728 = vmul.f32 %v711, %v727
        %v729 = vsub.f32 1.0, %v728
        %v730 = vmul.f32 %v727, %v729
        %v731 = vadd.f32 %v727, %v730
        %vm732 = vweird.f32 %v711
        %vm733 = vweird.f32 %v727
        %vm734 = vmor %vm732, %vm733
        %v735 = vsel %vm734, %v727, %v731
        %v736 = vand.u32 2147483647, %v711
        %vm737 = vcmp.eq.f32.partialorder %v736, 8.507059e+37
        %v738 = vand.u32 %v711, 2147483648
        %v739 = vor.u32 1.1754944e-38, %v738
        %v740 = vsel %vm737, %v739, %v735
        %v741 = vmul.f32 %v685, %v740
        %v743 = vperm.slane %v644, 0
        %v745 = vadd.f32 %v726, %v743
        %v746 = vadd.f32 %v741, %v743
        %v747 = vpack.c.bf16 %v746, %v745
        %v748 = vld [vmem:[%s3] sm:$0xf]
        %v749 = vld [vmem:[%s3 + $0x4] sm:$0xf]
        %v750 = vld [vmem:[%s3 + $0x8] sm:$0xf]
        %v751 = vld [vmem:[%s3 + $0xc] sm:$0xf]
        %v752 = vld [vmem:[%s3 + $0x10] sm:$0xf]
        %v753 = vld [vmem:[%s3 + $0x14] sm:$0xf]
        %v754 = vld [vmem:[%s3 + $0x18] sm:$0xf]
        %v755 = vld [vmem:[%s3 + $0x1c] sm:$0xf]
        %v756 = vld [vmem:[%s3 + $0x20] sm:$0xf]
        %v757 = vld [vmem:[%s3 + $0x24] sm:$0xf]
        %v758 = vld [vmem:[%s3 + $0x28] sm:$0xf]
        %v759 = vld [vmem:[%s3 + $0x2c] sm:$0xf]
        %v760 = vld [vmem:[%s3 + $0x30] sm:$0x3]
        %v761 = vld [vmem:[%s4] sm:$0x1]
        %v763 = vperm.slane %v761, 0
        %v778 = vunpack.c.l.b16 %v748
        %v779 = vunpack.c.l.b16 %v749
        %v780 = vunpack.c.l.b16 %v750
        %v781 = vunpack.c.l.b16 %v751
        %v782 = vunpack.c.l.b16 %v752
        %v783 = vunpack.c.l.b16 %v753
        %v784 = vunpack.c.l.b16 %v754
        %v785 = vunpack.c.l.b16 %v755
        %v786 = vunpack.c.l.b16 %v756
        %v787 = vunpack.c.l.b16 %v757
        %v788 = vunpack.c.l.b16 %v758
        %v789 = vunpack.c.l.b16 %v759
        %v790 = vunpack.c.l.b16 %v760
        %v791 = vpack.c.b16 %v779, %v778
        %v792 = vpack.c.b16 %v781, %v780
        %v793 = vpack.c.b16 %v783, %v782
        %v794 = vpack.c.b16 %v785, %v784
        %v795 = vpack.c.b16 %v787, %v786
        %v796 = vpack.c.b16 %v789, %v788
        %v797 = vpack.c.b16 %v790, %v790
        %v805 = vsel %vm645, %v747, 0
        %vm807 = vcmask 1041408
        %v809 = vsel %vm807, %v797, 0
        %811 = vmatpush.bf16.msra.mxu0 0
        %812 = vmatpush.bf16.msra.mxu0 %v809
        %813 = vmatpush.bf16.msra.mxu0 %v796
        %814 = vmatpush.bf16.msra.mxu0 %v795
        %815 = vmatpush.bf16.msra.mxu0 %v794
        %816 = vmatpush.bf16.msra.mxu0 %v793
        %817 = vmatpush.bf16.msra.mxu0 %v792
        %818 = vmatpush.bf16.msra.mxu0 %v791
        %819 = vmatmul.bf16.gmra.mxu0 %v805
        %v820 = vpop.f32.mrf.mxu0
        %v821 = vadd.f32 %v763, %v820
        %v822 = vpop.f32.mrf.mxu0
        %v823 = vadd.f32 %v763, %v822
        %824 = vdwg.mxu0
        %v825 = vld [vmem:[%s5] sm:$0xf]
        %v826 = vld [vmem:[%s5 + $0x4] sm:$0xf]
        %v827 = vld [vmem:[%s5 + $0x8] sm:$0xf]
        %v828 = vld [vmem:[%s5 + $0xc] sm:$0xf]
        %v829 = vld [vmem:[%s5 + $0x10] sm:$0xf]
        %v830 = vld [vmem:[%s5 + $0x14] sm:$0xf]
        %v831 = vld [vmem:[%s5 + $0x18] sm:$0xf]
        %v832 = vld [vmem:[%s5 + $0x1c] sm:$0xf]
        %v833 = vld [vmem:[%s5 + $0x20] sm:$0xf]
        %v834 = vld [vmem:[%s5 + $0x24] sm:$0xf]
        %v835 = vld [vmem:[%s5 + $0x28] sm:$0xf]
        %v836 = vld [vmem:[%s5 + $0x2c] sm:$0xf]
        %v837 = vld [vmem:[%s5 + $0x30] sm:$0x3]
        %v838 = vld [vmem:[%s6] sm:$0x1]
        %v840 = vperm.slane %v838, 0
        %v855 = vunpack.c.l.b16 %v825
        %v856 = vunpack.c.l.b16 %v826
        %v857 = vunpack.c.l.b16 %v827
        %v858 = vunpack.c.l.b16 %v828
        %v859 = vunpack.c.l.b16 %v829
        %v860 = vunpack.c.l.b16 %v830
        %v861 = vunpack.c.l.b16 %v831
        %v862 = vunpack.c.l.b16 %v832
        %v863 = vunpack.c.l.b16 %v833
        %v864 = vunpack.c.l.b16 %v834
        %v865 = vunpack.c.l.b16 %v835
        %v866 = vunpack.c.l.b16 %v836
        %v867 = vunpack.c.l.b16 %v837
        %v868 = vpack.c.b16 %v856, %v855
        %v869 = vpack.c.b16 %v858, %v857
        %v870 = vpack.c.b16 %v860, %v859
        %v871 = vpack.c.b16 %v862, %v861
        %v872 = vpack.c.b16 %v864, %v863
        %v873 = vpack.c.b16 %v866, %v865
        %v874 = vpack.c.b16 %v867, %v867
        %v882 = vsel %vm807, %v874, 0
        %884 = vmatpush.bf16.msra.mxu0 0
        %885 = vmatpush.bf16.msra.mxu0 %v882
        %886 = vmatpush.bf16.msra.mxu0 %v873
        %887 = vmatpush.bf16.msra.mxu0 %v872
        %888 = vmatpush.bf16.msra.mxu0 %v871
        %889 = vmatpush.bf16.msra.mxu0 %v870
        %890 = vmatpush.bf16.msra.mxu0 %v869
        %891 = vmatpush.bf16.msra.mxu0 %v868
        %892 = vmatmul.bf16.gmra.mxu0 %v805
        %v893 = vpop.f32.mrf.mxu0
        %v894 = vadd.f32 %v840, %v893
        %v895 = vpop.f32.mrf.mxu0
        %v896 = vadd.f32 %v840, %v895
        %897 = vdwg.mxu0
        %v898 = vld [vmem:[%s7] sm:$0xf]
        %v899 = vld [vmem:[%s7 + $0x4] sm:$0xf]
        %v900 = vld [vmem:[%s7 + $0x8] sm:$0xf]
        %v901 = vld [vmem:[%s7 + $0xc] sm:$0xf]
        %v902 = vld [vmem:[%s7 + $0x10] sm:$0xf]
        %v903 = vld [vmem:[%s7 + $0x14] sm:$0xf]
        %v904 = vld [vmem:[%s7 + $0x18] sm:$0xf]
        %v905 = vld [vmem:[%s7 + $0x1c] sm:$0xf]
        %v906 = vld [vmem:[%s7 + $0x20] sm:$0xf]
        %v907 = vld [vmem:[%s7 + $0x24] sm:$0xf]
        %v908 = vld [vmem:[%s7 + $0x28] sm:$0xf]
        %v909 = vld [vmem:[%s7 + $0x2c] sm:$0xf]
        %v910 = vld [vmem:[%s7 + $0x30] sm:$0x3]
        %v911 = vld [vmem:[%s8] sm:$0x1]
        %v913 = vperm.slane %v911, 0
        %v928 = vunpack.c.l.b16 %v898
        %v929 = vunpack.c.l.b16 %v899
        %v930 = vunpack.c.l.b16 %v900
        %v931 = vunpack.c.l.b16 %v901
        %v932 = vunpack.c.l.b16 %v902
        %v933 = vunpack.c.l.b16 %v903
        %v934 = vunpack.c.l.b16 %v904
        %v935 = vunpack.c.l.b16 %v905
        %v936 = vunpack.c.l.b16 %v906
        %v937 = vunpack.c.l.b16 %v907
        %v938 = vunpack.c.l.b16 %v908
        %v939 = vunpack.c.l.b16 %v909
        %v940 = vunpack.c.l.b16 %v910
        %v941 = vpack.c.b16 %v929, %v928
        %v942 = vpack.c.b16 %v931, %v930
        %v943 = vpack.c.b16 %v933, %v932
        %v944 = vpack.c.b16 %v935, %v934
        %v945 = vpack.c.b16 %v937, %v936
        %v946 = vpack.c.b16 %v939, %v938
        %v947 = vpack.c.b16 %v940, %v940
        %v955 = vsel %vm807, %v947, 0
        %957 = vmatpush.bf16.msra.mxu0 0
        %958 = vmatpush.bf16.msra.mxu0 %v955
        %959 = vmatpush.bf16.msra.mxu0 %v946
        %960 = vmatpush.bf16.msra.mxu0 %v945
        %961 = vmatpush.bf16.msra.mxu0 %v944
        %962 = vmatpush.bf16.msra.mxu0 %v943
        %963 = vmatpush.bf16.msra.mxu0 %v942
        %964 = vmatpush.bf16.msra.mxu0 %v941
        %965 = vmatmul.bf16.gmra.mxu0 %v805
        %v966 = vpop.f32.mrf.mxu0
        %v967 = vadd.f32 %v913, %v966
        %v968 = vpop.f32.mrf.mxu0
        %v969 = vadd.f32 %v913, %v968
        %970 = vdwg.mxu0
        %v971 = vpack.c.bf16 %v823, %v821
        %972 = vxpose.xlu0.b32.start [1/16] %v894, 128
        %973 = vxpose.xlu0.b32.cont [2/16] %v896, 128
        %974 = vxpose.xlu0.b32.cont [3/16] 0.0, 128
        %975 = vxpose.xlu0.b32.cont [4/16] 0.0, 128
        %976 = vxpose.xlu0.b32.cont [5/16] 0.0, 128
        %977 = vxpose.xlu0.b32.cont [6/16] 0.0, 128
        %978 = vxpose.xlu0.b32.cont [7/16] 0.0, 128
        %979 = vxpose.xlu0.b32.cont [8/16] 0.0, 128
        %980 = vxpose.xlu0.b32.cont [9/16] 0.0, 128
        %981 = vxpose.xlu0.b32.cont [10/16] 0.0, 128
        %982 = vxpose.xlu0.b32.cont [11/16] 0.0, 128
        %983 = vxpose.xlu0.b32.cont [12/16] 0.0, 128
        %984 = vxpose.xlu0.b32.cont [13/16] 0.0, 128
        %985 = vxpose.xlu0.b32.cont [14/16] 0.0, 128
        %986 = vxpose.xlu0.b32.cont [15/16] 0.0, 128
        %987 = vxpose.xlu0.b32.end [16/16] 0.0, 128
        %v988 = vpop.trf.xlu0
        %v989 = vpop.trf.xlu0
        %v990 = vpop.trf.xlu0
        %v991 = vpop.trf.xlu0
        %v992 = vpop.trf.xlu0
        %v993 = vpop.trf.xlu0
        %v994 = vpop.trf.xlu0
        %v995 = vpop.trf.xlu0
        %v996 = vpop.trf.xlu0
        %v997 = vpop.trf.xlu0
        %v998 = vpop.trf.xlu0
        %v999 = vpop.trf.xlu0
        %v1000 = vpop.trf.xlu0
        %v1001 = vpop.trf.xlu0
        %v1002 = vpop.trf.xlu0
        %v1003 = vpop.trf.xlu0
        %v1004 = vpack.c.bf16 %v989, %v988
        %v1005 = vpack.c.bf16 %v991, %v990
        %v1006 = vpack.c.bf16 %v993, %v992
        %v1007 = vpack.c.bf16 %v994, %v994
        %vm1008 = vcmask 408576
        %v1010 = vsel %vm1008, %v971, 0
        %vm1012 = vcmask 1040384
        %v1014 = vsel %vm1012, %v1007, 0
        %1016 = vmatpush.bf16.msra.mxu0 0
        %1017 = vmatpush.bf16.msra.mxu0 0
        %1018 = vmatpush.bf16.msra.mxu0 0
        %1019 = vmatpush.bf16.msra.mxu0 0
        %1020 = vmatpush.bf16.msra.mxu0 %v1014
        %1021 = vmatpush.bf16.msra.mxu0 %v1006
        %1022 = vmatpush.bf16.msra.mxu0 %v1005
        %1023 = vmatpush.bf16.msra.mxu0 %v1004
        %1024 = vmatmul.bf16.gmra.mxu0 %v1010
        %v1025 = vpop.f32.mrf.mxu0
        %v1026 = vadd.f32 0.0, %v1025
        %v1027 = vpop.f32.mrf.mxu0
        %v1028 = vadd.f32 0.0, %v1027
        %1029 = vdwg.mxu0
        %v1030 = vmul.f32 %v1026, 0.14142136
        %v1031 = vmul.f32 %v1028, 0.14142136
        %vm1032 = vcmask 72704
        %v1033 = vsel %vm1032, %v1030, -inf
        %1034 = vmax.xlane.f32.xlu0 %v1033
        %v1035 = vpop.xlane.xlu0 %1034
        %vm1036 = vcmask 65536
        %v1037 = vsel %vm1036, %v1031, -inf
        %1038 = vmax.xlane.f32.xlu0 %v1037
        %v1039 = vpop.xlane.xlu0 %1038
        %v1040 = vsub.f32 %v1030, %v1035
        %v1041 = vsub.f32 %v1031, %v1039
        %v1042 = vmul.f32 %v1040, 1.442695
        %v1043 = vpow.pop %v1042
        %v1044 = vmul.f32 %v1041, 1.442695
        %v1045 = vpow.pop %v1044
        %v1046 = vsel %vm1032, %v1043, 0.0
        %1047 = vadd.xlane.f32.xlu0 %v1046
        %v1048 = vpop.xlane.xlu0 %1047
        %v1049 = vsel %vm1036, %v1045, 0.0
        %1050 = vadd.xlane.f32.xlu0 %v1049
        %v1051 = vpop.xlane.xlu0 %1050
        %v1052 = vrcp.pop %v1048
        %v1053 = vmul.f32 %v1048, %v1052
        %v1054 = vsub.f32 1.0, %v1053
        %v1055 = vmul.f32 %v1052, %v1054
        %v1056 = vadd.f32 %v1052, %v1055
        %vm1057 = vweird.f32 %v1048
        %vm1058 = vweird.f32 %v1052
        %vm1059 = vmor %vm1057, %vm1058
        %v1060 = vsel %vm1059, %v1052, %v1056
        %v1061 = vand.u32 2147483647, %v1048
        %vm1062 = vcmp.eq.f32.partialorder %v1061, 8.507059e+37
        %v1063 = vand.u32 %v1048, 2147483648
        %v1064 = vor.u32 1.1754944e-38, %v1063
        %v1065 = vsel %vm1062, %v1064, %v1060
        %v1066 = vmul.f32 %v1043, %v1065
        %v1067 = vrcp.pop %v1051
        %v1068 = vmul.f32 %v1051, %v1067
        %v1069 = vsub.f32 1.0, %v1068
        %v1070 = vmul.f32 %v1067, %v1069
        %v1071 = vadd.f32 %v1067, %v1070
        %vm1072 = vweird.f32 %v1051
        %vm1073 = vweird.f32 %v1067
        %vm1074 = vmor %vm1072, %vm1073
        %v1075 = vsel %vm1074, %v1067, %v1071
        %v1076 = vand.u32 2147483647, %v1051
        %vm1077 = vcmp.eq.f32.partialorder %v1076, 8.507059e+37
        %v1078 = vand.u32 %v1051, 2147483648
        %v1079 = vor.u32 1.1754944e-38, %v1078
        %v1080 = vsel %vm1077, %v1079, %v1075
        %v1081 = vmul.f32 %v1045, %v1080
        %v1082 = vpack.c.bf16 %v1081, %v1066
        %v1083 = vpack.c.bf16 %v969, %v967
        %v1085 = vsel %vm1032, %v1082, 0
        %vm1087 = vcmask 1043456
        %vm1088 = vcmask 1044480
        %v1089 = vsel %vm1087, 4294967295, 65535
        %v1090 = vsel %vm1088, %v1089, 0
        %v1092 = vand.u32 %v1083, %v1090
        %1094 = vmatpush.bf16.msra.mxu0 0
        %1095 = vmatpush.bf16.msra.mxu0 0
        %1096 = vmatpush.bf16.msra.mxu0 0
        %1097 = vmatpush.bf16.msra.mxu0 0
        %1098 = vmatpush.bf16.msra.mxu0 0
        %1099 = vmatpush.bf16.msra.mxu0 0
        %1100 = vmatpush.bf16.msra.mxu0 0
        %1101 = vmatpush.bf16.msra.mxu0 %v1092
        %1102 = vmatmul.bf16.gmra.mxu0 %v1085
        %v1103 = vpop.f32.mrf.mxu0
        %v1104 = vadd.f32 0.0, %v1103
        %v1105 = vpop.f32.mrf.mxu0
        %v1106 = vadd.f32 0.0, %v1105
        %1107 = vdwg.mxu0
        %v1108 = vpack.c.bf16 %v1106, %v1104
        %v1109 = vld [vmem:[%s9] sm:$0xf]
        %v1110 = vld [vmem:[%s9 + $0x4] sm:$0xf]
        %v1111 = vld [vmem:[%s9 + $0x8] sm:$0xf]
        %v1112 = vld [vmem:[%s9 + $0xc] sm:$0xf]
        %v1113 = vld [vmem:[%s9 + $0x10] sm:$0xf]
        %v1114 = vld [vmem:[%s9 + $0x14] sm:$0xf]
        %v1115 = vld [vmem:[%s9 + $0x18] sm:$0x1]
        %s1116 = scalar_lea.vmem %s3, 52
        %v1117 = vld [vmem:[%s1116] sm:$0xf]
        %v1118 = vld [vmem:[%s1116 + $0x4] sm:$0xf]
        %v1119 = vld [vmem:[%s1116 + $0x8] sm:$0xf]
        %v1120 = vld [vmem:[%s1116 + $0xc] sm:$0xf]
        %v1121 = vld [vmem:[%s1116 + $0x10] sm:$0xf]
        %v1122 = vld [vmem:[%s1116 + $0x14] sm:$0xf]
        %v1123 = vld [vmem:[%s1116 + $0x18] sm:$0xf]
        %v1124 = vld [vmem:[%s1116 + $0x1c] sm:$0xf]
        %v1125 = vld [vmem:[%s1116 + $0x20] sm:$0xf]
        %v1126 = vld [vmem:[%s1116 + $0x24] sm:$0xf]
        %v1127 = vld [vmem:[%s1116 + $0x28] sm:$0xf]
        %v1128 = vld [vmem:[%s1116 + $0x2c] sm:$0xf]
        %v1129 = vld [vmem:[%s1116 + $0x30] sm:$0x3]
        %s1130 = scalar_lea.vmem %s4, 1
        %v1131 = vld [vmem:[%s1130] sm:$0x1]
        %v1133 = vperm.slane %v1131, 0
        %v1148 = vunpack.c.l.b16 %v1117
        %v1149 = vunpack.c.l.b16 %v1118
        %v1150 = vunpack.c.l.b16 %v1119
        %v1151 = vunpack.c.l.b16 %v1120
        %v1152 = vunpack.c.l.b16 %v1121
        %v1153 = vunpack.c.l.b16 %v1122
        %v1154 = vunpack.c.l.b16 %v1123
        %v1155 = vunpack.c.l.b16 %v1124
        %v1156 = vunpack.c.l.b16 %v1125
        %v1157 = vunpack.c.l.b16 %v1126
        %v1158 = vunpack.c.l.b16 %v1127
        %v1159 = vunpack.c.l.b16 %v1128
        %v1160 = vunpack.c.l.b16 %v1129
        %v1161 = vpack.c.b16 %v1149, %v1148
        %v1162 = vpack.c.b16 %v1151, %v1150
        %v1163 = vpack.c.b16 %v1153, %v1152
        %v1164 = vpack.c.b16 %v1155, %v1154
        %v1165 = vpack.c.b16 %v1157, %v1156
        %v1166 = vpack.c.b16 %v1159, %v1158
        %v1167 = vpack.c.b16 %v1160, %v1160
        %v1175 = vsel %vm807, %v1167, 0
        %1177 = vmatpush.bf16.msra.mxu0 0
        %1178 = vmatpush.bf16.msra.mxu0 %v1175
        %1179 = vmatpush.bf16.msra.mxu0 %v1166
        %1180 = vmatpush.bf16.msra.mxu0 %v1165
        %1181 = vmatpush.bf16.msra.mxu0 %v1164
        %1182 = vmatpush.bf16.msra.mxu0 %v1163
        %1183 = vmatpush.bf16.msra.mxu0 %v1162
        %1184 = vmatpush.bf16.msra.mxu0 %v1161
        %1185 = vmatmul.bf16.gmra.mxu0 %v805
        %v1186 = vpop.f32.mrf.mxu0
        %v1187 = vadd.f32 %v1133, %v1186
        %v1188 = vpop.f32.mrf.mxu0
        %v1189 = vadd.f32 %v1133, %v1188
        %1190 = vdwg.mxu0
        %s1191 = scalar_lea.vmem %s5, 52
        %v1192 = vld [vmem:[%s1191] sm:$0xf]
        %v1193 = vld [vmem:[%s1191 + $0x4] sm:$0xf]
        %v1194 = vld [vmem:[%s1191 + $0x8] sm:$0xf]
        %v1195 = vld [vmem:[%s1191 + $0xc] sm:$0xf]
        %v1196 = vld [vmem:[%s1191 + $0x10] sm:$0xf]
        %v1197 = vld [vmem:[%s1191 + $0x14] sm:$0xf]
        %v1198 = vld [vmem:[%s1191 + $0x18] sm:$0xf]
        %v1199 = vld [vmem:[%s1191 + $0x1c] sm:$0xf]
        %v1200 = vld [vmem:[%s1191 + $0x20] sm:$0xf]
        %v1201 = vld [vmem:[%s1191 + $0x24] sm:$0xf]
        %v1202 = vld [vmem:[%s1191 + $0x28] sm:$0xf]
        %v1203 = vld [vmem:[%s1191 + $0x2c] sm:$0xf]
        %v1204 = vld [vmem:[%s1191 + $0x30] sm:$0x3]
        %s1205 = scalar_lea.vmem %s6, 1
        %v1206 = vld [vmem:[%s1205] sm:$0x1]
        %v1208 = vperm.slane %v1206, 0
        %v1223 = vunpack.c.l.b16 %v1192
        %v1224 = vunpack.c.l.b16 %v1193
        %v1225 = vunpack.c.l.b16 %v1194
        %v1226 = vunpack.c.l.b16 %v1195
        %v1227 = vunpack.c.l.b16 %v1196
        %v1228 = vunpack.c.l.b16 %v1197
        %v1229 = vunpack.c.l.b16 %v1198
        %v1230 = vunpack.c.l.b16 %v1199
        %v1231 = vunpack.c.l.b16 %v1200
        %v1232 = vunpack.c.l.b16 %v1201
        %v1233 = vunpack.c.l.b16 %v1202
        %v1234 = vunpack.c.l.b16 %v1203
        %v1235 = vunpack.c.l.b16 %v1204
        %v1236 = vpack.c.b16 %v1224, %v1223
        %v1237 = vpack.c.b16 %v1226, %v1225
        %v1238 = vpack.c.b16 %v1228, %v1227
        %v1239 = vpack.c.b16 %v1230, %v1229
        %v1240 = vpack.c.b16 %v1232, %v1231
        %v1241 = vpack.c.b16 %v1234, %v1233
        %v1242 = vpack.c.b16 %v1235, %v1235
        %v1250 = vsel %vm807, %v1242, 0
        %1252 = vmatpush.bf16.msra.mxu0 0
        %1253 = vmatpush.bf16.msra.mxu0 %v1250
        %1254 = vmatpush.bf16.msra.mxu0 %v1241
        %1255 = vmatpush.bf16.msra.mxu0 %v1240
        %1256 = vmatpush.bf16.msra.mxu0 %v1239
        %1257 = vmatpush.bf16.msra.mxu0 %v1238
        %1258 = vmatpush.bf16.msra.mxu0 %v1237
        %1259 = vmatpush.bf16.msra.mxu0 %v1236
        %1260 = vmatmul.bf16.gmra.mxu0 %v805
        %v1261 = vpop.f32.mrf.mxu0
        %v1262 = vadd.f32 %v1208, %v1261
        %v1263 = vpop.f32.mrf.mxu0
        %v1264 = vadd.f32 %v1208, %v1263
        %1265 = vdwg.mxu0
        %s1266 = scalar_lea.vmem %s7, 52
        %v1267 = vld [vmem:[%s1266] sm:$0xf]
        %v1268 = vld [vmem:[%s1266 + $0x4] sm:$0xf]
        %v1269 = vld [vmem:[%s1266 + $0x8] sm:$0xf]
        %v1270 = vld [vmem:[%s1266 + $0xc] sm:$0xf]
        %v1271 = vld [vmem:[%s1266 + $0x10] sm:$0xf]
        %v1272 = vld [vmem:[%s1266 + $0x14] sm:$0xf]
        %v1273 = vld [vmem:[%s1266 + $0x18] sm:$0xf]
        %v1274 = vld [vmem:[%s1266 + $0x1c] sm:$0xf]
        %v1275 = vld [vmem:[%s1266 + $0x20] sm:$0xf]
        %v1276 = vld [vmem:[%s1266 + $0x24] sm:$0xf]
        %v1277 = vld [vmem:[%s1266 + $0x28] sm:$0xf]
        %v1278 = vld [vmem:[%s1266 + $0x2c] sm:$0xf]
        %v1279 = vld [vmem:[%s1266 + $0x30] sm:$0x3]
        %s1280 = scalar_lea.vmem %s8, 1
        %v1281 = vld [vmem:[%s1280] sm:$0x1]
        %v1283 = vperm.slane %v1281, 0
        %v1298 = vunpack.c.l.b16 %v1267
        %v1299 = vunpack.c.l.b16 %v1268
        %v1300 = vunpack.c.l.b16 %v1269
        %v1301 = vunpack.c.l.b16 %v1270
        %v1302 = vunpack.c.l.b16 %v1271
        %v1303 = vunpack.c.l.b16 %v1272
        %v1304 = vunpack.c.l.b16 %v1273
        %v1305 = vunpack.c.l.b16 %v1274
        %v1306 = vunpack.c.l.b16 %v1275
        %v1307 = vunpack.c.l.b16 %v1276
        %v1308 = vunpack.c.l.b16 %v1277
        %v1309 = vunpack.c.l.b16 %v1278
        %v1310 = vunpack.c.l.b16 %v1279
        %v1311 = vpack.c.b16 %v1299, %v1298
        %v1312 = vpack.c.b16 %v1301, %v1300
        %v1313 = vpack.c.b16 %v1303, %v1302
        %v1314 = vpack.c.b16 %v1305, %v1304
        %v1315 = vpack.c.b16 %v1307, %v1306
        %v1316 = vpack.c.b16 %v1309, %v1308
        %v1317 = vpack.c.b16 %v1310, %v1310
        %v1325 = vsel %vm807, %v1317, 0
        %1327 = vmatpush.bf16.msra.mxu0 0
        %1328 = vmatpush.bf16.msra.mxu0 %v1325
        %1329 = vmatpush.bf16.msra.mxu0 %v1316
        %1330 = vmatpush.bf16.msra.mxu0 %v1315
        %1331 = vmatpush.bf16.msra.mxu0 %v1314
        %1332 = vmatpush.bf16.msra.mxu0 %v1313
        %1333 = vmatpush.bf16.msra.mxu0 %v1312
        %1334 = vmatpush.bf16.msra.mxu0 %v1311
        %1335 = vmatmul.bf16.gmra.mxu0 %v805
        %v1336 = vpop.f32.mrf.mxu0
        %v1337 = vadd.f32 %v1283, %v1336
        %v1338 = vpop.f32.mrf.mxu0
        %v1339 = vadd.f32 %v1283, %v1338
        %1340 = vdwg.mxu0
        %v1341 = vpack.c.bf16 %v1189, %v1187
        %1342 = vxpose.xlu0.b32.start [1/16] %v1262, 128
        %1343 = vxpose.xlu0.b32.cont [2/16] %v1264, 128
        %1344 = vxpose.xlu0.b32.cont [3/16] 0.0, 128
        %1345 = vxpose.xlu0.b32.cont [4/16] 0.0, 128
        %1346 = vxpose.xlu0.b32.cont [5/16] 0.0, 128
        %1347 = vxpose.xlu0.b32.cont [6/16] 0.0, 128
        %1348 = vxpose.xlu0.b32.cont [7/16] 0.0, 128
        %1349 = vxpose.xlu0.b32.cont [8/16] 0.0, 128
        %1350 = vxpose.xlu0.b32.cont [9/16] 0.0, 128
        %1351 = vxpose.xlu0.b32.cont [10/16] 0.0, 128
        %1352 = vxpose.xlu0.b32.cont [11/16] 0.0, 128
        %1353 = vxpose.xlu0.b32.cont [12/16] 0.0, 128
        %1354 = vxpose.xlu0.b32.cont [13/16] 0.0, 128
        %1355 = vxpose.xlu0.b32.cont [14/16] 0.0, 128
        %1356 = vxpose.xlu0.b32.cont [15/16] 0.0, 128
        %1357 = vxpose.xlu0.b32.end [16/16] 0.0, 128
        %v1358 = vpop.trf.xlu0
        %v1359 = vpop.trf.xlu0
        %v1360 = vpop.trf.xlu0
        %v1361 = vpop.trf.xlu0
        %v1362 = vpop.trf.xlu0
        %v1363 = vpop.trf.xlu0
        %v1364 = vpop.trf.xlu0
        %v1365 = vpop.trf.xlu0
        %v1366 = vpop.trf.xlu0
        %v1367 = vpop.trf.xlu0
        %v1368 = vpop.trf.xlu0
        %v1369 = vpop.trf.xlu0
        %v1370 = vpop.trf.xlu0
        %v1371 = vpop.trf.xlu0
        %v1372 = vpop.trf.xlu0
        %v1373 = vpop.trf.xlu0
        %v1374 = vpack.c.bf16 %v1359, %v1358
        %v1375 = vpack.c.bf16 %v1361, %v1360
        %v1376 = vpack.c.bf16 %v1363, %v1362
        %v1377 = vpack.c.bf16 %v1364, %v1364
        %v1379 = vsel %vm1008, %v1341, 0
        %v1382 = vsel %vm1012, %v1377, 0
        %1384 = vmatpush.bf16.msra.mxu0 0
        %1385 = vmatpush.bf16.msra.mxu0 0
        %1386 = vmatpush.bf16.msra.mxu0 0
        %1387 = vmatpush.bf16.msra.mxu0 0
        %1388 = vmatpush.bf16.msra.mxu0 %v1382
        %1389 = vmatpush.bf16.msra.mxu0 %v1376
        %1390 = vmatpush.bf16.msra.mxu0 %v1375
        %1391 = vmatpush.bf16.msra.mxu0 %v1374
        %1392 = vmatmul.bf16.gmra.mxu0 %v1379
        %v1393 = vpop.f32.mrf.mxu0
        %v1394 = vadd.f32 0.0, %v1393
        %v1395 = vpop.f32.mrf.mxu0
        %v1396 = vadd.f32 0.0, %v1395
        %1397 = vdwg.mxu0
        %v1398 = vmul.f32 %v1394, 0.14142136
        %v1399 = vmul.f32 %v1396, 0.14142136
        %v1400 = vsel %vm1032, %v1398, -inf
        %1401 = vmax.xlane.f32.xlu0 %v1400
        %v1402 = vpop.xlane.xlu0 %1401
        %v1403 = vsel %vm1036, %v1399, -inf
        %1404 = vmax.xlane.f32.xlu0 %v1403
        %v1405 = vpop.xlane.xlu0 %1404
        %v1406 = vsub.f32 %v1398, %v1402
        %v1407 = vsub.f32 %v1399, %v1405
        %v1408 = vmul.f32 %v1406, 1.442695
        %v1409 = vpow.pop %v1408
        %v1410 = vmul.f32 %v1407, 1.442695
        %v1411 = vpow.pop %v1410
        %v1412 = vsel %vm1032, %v1409, 0.0
        %1413 = vadd.xlane.f32.xlu0 %v1412
        %v1414 = vpop.xlane.xlu0 %1413
        %v1415 = vsel %vm1036, %v1411, 0.0
        %1416 = vadd.xlane.f32.xlu0 %v1415
        %v1417 = vpop.xlane.xlu0 %1416
        %v1418 = vrcp.pop %v1414
        %v1419 = vmul.f32 %v1414, %v1418
        %v1420 = vsub.f32 1.0, %v1419
        %v1421 = vmul.f32 %v1418, %v1420
        %v1422 = vadd.f32 %v1418, %v1421
        %vm1423 = vweird.f32 %v1414
        %vm1424 = vweird.f32 %v1418
        %vm1425 = vmor %vm1423, %vm1424
        %v1426 = vsel %vm1425, %v1418, %v1422
        %v1427 = vand.u32 2147483647, %v1414
        %vm1428 = vcmp.eq.f32.partialorder %v1427, 8.507059e+37
        %v1429 = vand.u32 %v1414, 2147483648
        %v1430 = vor.u32 1.1754944e-38, %v1429
        %v1431 = vsel %vm1428, %v1430, %v1426
        %v1432 = vmul.f32 %v1409, %v1431
        %v1433 = vrcp.pop %v1417
        %v1434 = vmul.f32 %v1417, %v1433
        %v1435 = vsub.f32 1.0, %v1434
        %v1436 = vmul.f32 %v1433, %v1435
        %v1437 = vadd.f32 %v1433, %v1436
        %vm1438 = vweird.f32 %v1417
        %vm1439 = vweird.f32 %v1433
        %vm1440 = vmor %vm1438, %vm1439
        %v1441 = vsel %vm1440, %v1433, %v1437
        %v1442 = vand.u32 2147483647, %v1417
        %vm1443 = vcmp.eq.f32.partialorder %v1442, 8.507059e+37
        %v1444 = vand.u32 %v1417, 2147483648
        %v1445 = vor.u32 1.1754944e-38, %v1444
        %v1446 = vsel %vm1443, %v1445, %v1441
        %v1447 = vmul.f32 %v1411, %v1446
        %v1448 = vpack.c.bf16 %v1447, %v1432
        %v1449 = vpack.c.bf16 %v1339, %v1337
        %v1451 = vsel %vm1032, %v1448, 0
        %v1454 = vand.u32 %v1449, %v1090
        %1456 = vmatpush.bf16.msra.mxu0 0
        %1457 = vmatpush.bf16.msra.mxu0 0
        %1458 = vmatpush.bf16.msra.mxu0 0
        %1459 = vmatpush.bf16.msra.mxu0 0
        %1460 = vmatpush.bf16.msra.mxu0 0
        %1461 = vmatpush.bf16.msra.mxu0 0
        %1462 = vmatpush.bf16.msra.mxu0 0
        %1463 = vmatpush.bf16.msra.mxu0 %v1454
        %1464 = vmatmul.bf16.gmra.mxu0 %v1451
        %v1465 = vpop.f32.mrf.mxu0
        %v1466 = vadd.f32 0.0, %v1465
        %v1467 = vpop.f32.mrf.mxu0
        %v1468 = vadd.f32 0.0, %v1467
        %1469 = vdwg.mxu0
        %v1470 = vpack.c.bf16 %v1468, %v1466
        %s1471 = scalar_lea.vmem %s9, 28
        %v1472 = vld [vmem:[%s1471] sm:$0xf]
        %v1473 = vld [vmem:[%s1471 + $0x4] sm:$0xf]
        %v1474 = vld [vmem:[%s1471 + $0x8] sm:$0xf]
        %v1475 = vld [vmem:[%s1471 + $0xc] sm:$0xf]
        %v1476 = vld [vmem:[%s1471 + $0x10] sm:$0xf]
        %v1477 = vld [vmem:[%s1471 + $0x14] sm:$0xf]
        %v1478 = vld [vmem:[%s1471 + $0x18] sm:$0x1]
        %v1486 = vunpack.c.l.b16 %v1472
        %v1487 = vunpack.c.l.b16 %v1473
        %v1488 = vunpack.c.l.b16 %v1474
        %v1489 = vunpack.c.l.b16 %v1475
        %v1490 = vunpack.c.l.b16 %v1476
        %v1491 = vunpack.c.l.b16 %v1477
        %v1492 = vunpack.c.l.b16 %v1478
        %v1493 = vpack.c.b16 %v1487, %v1486
        %v1494 = vpack.c.b16 %v1489, %v1488
        %v1495 = vpack.c.b16 %v1491, %v1490
        %v1496 = vpack.c.b16 %v1492, %v1492
        %v1501 = vsel %vm1008, %v1470, 0
        %v1504 = vsel %vm1012, %v1496, 0
        %1506 = vmatpush.bf16.msra.mxu0 0
        %1507 = vmatpush.bf16.msra.mxu0 0
        %1508 = vmatpush.bf16.msra.mxu0 0
        %1509 = vmatpush.bf16.msra.mxu0 0
        %1510 = vmatpush.bf16.msra.mxu0 %v1504
        %1511 = vmatpush.bf16.msra.mxu0 %v1495
        %1512 = vmatpush.bf16.msra.mxu0 %v1494
        %1513 = vmatpush.bf16.msra.mxu0 %v1493
        %1514 = vmatmul.bf16.gmra.mxu0 %v1501
        %v1515 = vpop.f32.mrf.mxu0
        %v1516 = vadd.f32 0.0, %v1515
        %v1517 = vpop.f32.mrf.mxu0
        %v1518 = vadd.f32 0.0, %v1517
        %1519 = vdwg.mxu0
        %v1527 = vunpack.c.l.b16 %v1109
        %v1528 = vunpack.c.l.b16 %v1110
        %v1529 = vunpack.c.l.b16 %v1111
        %v1530 = vunpack.c.l.b16 %v1112
        %v1531 = vunpack.c.l.b16 %v1113
        %v1532 = vunpack.c.l.b16 %v1114
        %v1533 = vunpack.c.l.b16 %v1115
        %v1534 = vpack.c.b16 %v1528, %v1527
        %v1535 = vpack.c.b16 %v1530, %v1529
        %v1536 = vpack.c.b16 %v1532, %v1531
        %v1537 = vpack.c.b16 %v1533, %v1533
        %v1542 = vsel %vm1008, %v1108, 0
        %v1545 = vsel %vm1012, %v1537, 0
        %1547 = vmatpush.bf16.msra.mxu0 0
        %1548 = vmatpush.bf16.msra.mxu0 0
        %1549 = vmatpush.bf16.msra.mxu0 0
        %1550 = vmatpush.bf16.msra.mxu0 0
        %1551 = vmatpush.bf16.msra.mxu0 %v1545
        %1552 = vmatpush.bf16.msra.mxu0 %v1536
        %1553 = vmatpush.bf16.msra.mxu0 %v1535
        %1554 = vmatpush.bf16.msra.mxu0 %v1534
        %1555 = vmatmul.bf16.gmra.mxu0 %v1542
        %v1556 = vpop.f32.mrf.mxu0
        %v1557 = vadd.f32 %v1516, %v1556
        %v1558 = vpop.f32.mrf.mxu0
        %v1559 = vadd.f32 %v1518, %v1558
        %1560 = vdwg.mxu0
        %v1561 = vadd.f32 %v641, %v1557
        %v1562 = vadd.f32 %v642, %v1559
        %v1563 = vld [vmem:[%s10] sm:$0x1]
        %v1565 = vperm.slane %v1563, 0
        %v1567 = vadd.f32 %v1561, %v1565
        %v1568 = vadd.f32 %v1562, %v1565
        %v1569 = vld [vmem:[%s11] sm:$0x1]
        %v1570 = vld [vmem:[%s12] sm:$0x1]
        %v1571 = vsel %vm645, %v1567, 0.0
        %1572 = vadd.xlane.f32.xlu0 %v1571
        %v1573 = vpop.xlane.xlu0 %1572
        %v1574 = vsel %vm649, %v1568, 0.0
        %1575 = vadd.xlane.f32.xlu0 %v1574
        %v1576 = vpop.xlane.xlu0 %1575
        %v1577 = vmul.f32 %v1573, %v659
        %v1578 = vmul.f32 %v1576, %v659
        %v1579 = vsub.f32 %v1567, %v1577
        %v1580 = vsub.f32 %v1568, %v1578
        %v1581 = vmul.f32 %v1579, %v1579
        %v1582 = vmul.f32 %v1580, %v1580
        %v1583 = vsel %vm645, %v1581, 0.0
        %1584 = vadd.xlane.f32.xlu0 %v1583
        %v1585 = vpop.xlane.xlu0 %1584
        %v1586 = vsel %vm649, %v1582, 0.0
        %1587 = vadd.xlane.f32.xlu0 %v1586
        %v1588 = vpop.xlane.xlu0 %1587
        %v1589 = vmul.f32 %v1585, %v678
        %v1590 = vmul.f32 %v1588, %v678
        %v1592 = vperm.slane %v1569, 0
        %v1594 = vmul.f32 %v1592, %v1579
        %v1595 = vmul.f32 %v1592, %v1580
        %v1596 = vrsqrt.pop %v1589
        %v1597 = vmul.f32 %v1596, %v1589
        %v1598 = vmul.f32 %v1597, %v1596
        %v1599 = vmul.f32 0.5, %v1598
        %v1600 = vsub.f32 1.5, %v1599
        %v1601 = vmul.f32 %v1596, %v1600
        %v1602 = vmul.f32 %v1589, %v1601
        %vm1603 = vcmp.eq.f32.partialorder %v1589, inf
        %v1604 = vsel %vm1603, %v1589, %v1602
        %vm1605 = vcmp.eq.f32.partialorder %v1589, 0.0
        %v1606 = vand.u32 %v1589, 2147483648
        %v1607 = vsel %vm1605, %v1606, %v1604
        %v1608 = vrsqrt.pop %v1590
        %v1609 = vmul.f32 %v1608, %v1590
        %v1610 = vmul.f32 %v1609, %v1608
        %v1611 = vmul.f32 0.5, %v1610
        %v1612 = vsub.f32 1.5, %v1611
        %v1613 = vmul.f32 %v1608, %v1612
        %v1614 = vmul.f32 %v1590, %v1613
        %vm1615 = vcmp.eq.f32.partialorder %v1590, inf
        %v1616 = vsel %vm1615, %v1590, %v1614
        %vm1617 = vcmp.eq.f32.partialorder %v1590, 0.0
        %v1618 = vand.u32 %v1590, 2147483648
        %v1619 = vsel %vm1617, %v1618, %v1616
        %v1620 = vadd.f32 %v1607, 1e-06
        %v1621 = vadd.f32 %v1619, 1e-06
        %v1622 = vrcp.pop %v1620
        %v1623 = vmul.f32 %v1620, %v1622
        %v1624 = vsub.f32 1.0, %v1623
        %v1625 = vmul.f32 %v1622, %v1624
        %v1626 = vadd.f32 %v1622, %v1625
        %vm1627 = vweird.f32 %v1620
        %vm1628 = vweird.f32 %v1622
        %vm1629 = vmor %vm1627, %vm1628
        %v1630 = vsel %vm1629, %v1622, %v1626
        %v1631 = vand.u32 2147483647, %v1620
        %vm1632 = vcmp.eq.f32.partialorder %v1631, 8.507059e+37
        %v1633 = vand.u32 %v1620, 2147483648
        %v1634 = vor.u32 1.1754944e-38, %v1633
        %v1635 = vsel %vm1632, %v1634, %v1630
        %v1636 = vmul.f32 %v1594, %v1635
        %v1637 = vrcp.pop %v1621
        %v1638 = vmul.f32 %v1621, %v1637
        %v1639 = vsub.f32 1.0, %v1638
        %v1640 = vmul.f32 %v1637, %v1639
        %v1641 = vadd.f32 %v1637, %v1640
        %vm1642 = vweird.f32 %v1621
        %vm1643 = vweird.f32 %v1637
        %vm1644 = vmor %vm1642, %vm1643
        %v1645 = vsel %vm1644, %v1637, %v1641
        %v1646 = vand.u32 2147483647, %v1621
        %vm1647 = vcmp.eq.f32.partialorder %v1646, 8.507059e+37
        %v1648 = vand.u32 %v1621, 2147483648
        %v1649 = vor.u32 1.1754944e-38, %v1648
        %v1650 = vsel %vm1647, %v1649, %v1645
        %v1651 = vmul.f32 %v1595, %v1650
        %v1653 = vperm.slane %v1570, 0
        %v1655 = vadd.f32 %v1636, %v1653
        %v1656 = vadd.f32 %v1651, %v1653
        %v1657 = vpack.c.bf16 %v1656, %v1655
        %v1658 = vld [vmem:[%s13] sm:$0xff]
        %v1659 = vld [vmem:[%s13 + $0x8] sm:$0xff]
        %v1660 = vld [vmem:[%s13 + $0x10] sm:$0xff]
        %v1661 = vld [vmem:[%s13 + $0x18] sm:$0xff]
        %v1662 = vld [vmem:[%s13 + $0x20] sm:$0xff]
        %v1663 = vld [vmem:[%s13 + $0x28] sm:$0xff]
        %v1664 = vld [vmem:[%s13 + $0x30] sm:$0xff]
        %v1665 = vld [vmem:[%s13 + $0x38] sm:$0xff]
        %v1666 = vld [vmem:[%s13 + $0x40] sm:$0xff]
        %v1667 = vld [vmem:[%s13 + $0x48] sm:$0xff]
        %v1668 = vld [vmem:[%s13 + $0x50] sm:$0xff]
        %v1669 = vld [vmem:[%s13 + $0x58] sm:$0xff]
        %v1670 = vld [vmem:[%s13 + $0x60] sm:$0xff]
        %v1671 = vld [vmem:[%s13 + $0x68] sm:$0xff]
        %v1672 = vld [vmem:[%s13 + $0x70] sm:$0xff]
        %v1673 = vld [vmem:[%s13 + $0x78] sm:$0xff]
        %v1674 = vld [vmem:[%s13 + $0x80] sm:$0xff]
        %v1675 = vld [vmem:[%s13 + $0x88] sm:$0xff]
        %v1676 = vld [vmem:[%s13 + $0x90] sm:$0xff]
        %v1677 = vld [vmem:[%s13 + $0x98] sm:$0xff]
        %v1678 = vld [vmem:[%s13 + $0xa0] sm:$0xff]
        %v1679 = vld [vmem:[%s13 + $0xa8] sm:$0xff]
        %v1680 = vld [vmem:[%s13 + $0xb0] sm:$0xff]
        %v1681 = vld [vmem:[%s13 + $0xb8] sm:$0xff]
        %v1682 = vld [vmem:[%s13 + $0xc0] sm:$0x33]
        %v1683 = vld [vmem:[%s13 + $0xc8] sm:$0x33]
        %v1684 = vld [vmem:[%s14] sm:$0xf]
        %v1686 = vperm.slane %v1684, 0
        %v1687 = vperm.slane %v1684, 1
        %v1688 = vperm.slane %v1684, 2
        %v1689 = vperm.slane %v1684, 3
        %v1720 = vunpack.c.l.b16 %v1658
        %v1721 = vunpack.c.h.b16 %v1658
        %v1722 = vunpack.c.l.b16 %v1659
        %v1723 = vunpack.c.h.b16 %v1659
        %v1724 = vunpack.c.l.b16 %v1660
        %v1725 = vunpack.c.h.b16 %v1660
        %v1726 = vunpack.c.l.b16 %v1661
        %v1727 = vunpack.c.h.b16 %v1661
        %v1728 = vunpack.c.l.b16 %v1662
        %v1729 = vunpack.c.h.b16 %v1662
        %v1730 = vunpack.c.l.b16 %v1663
        %v1731 = vunpack.c.h.b16 %v1663
        %v1732 = vunpack.c.l.b16 %v1664
        %v1733 = vunpack.c.h.b16 %v1664
        %v1734 = vunpack.c.l.b16 %v1665
        %v1735 = vunpack.c.h.b16 %v1665
        %v1736 = vunpack.c.l.b16 %v1666
        %v1737 = vunpack.c.h.b16 %v1666
        %v1738 = vunpack.c.l.b16 %v1667
        %v1739 = vunpack.c.h.b16 %v1667
        %v1740 = vunpack.c.l.b16 %v1668
        %v1741 = vunpack.c.h.b16 %v1668
        %v1742 = vunpack.c.l.b16 %v1669
        %v1743 = vunpack.c.h.b16 %v1669
        %v1744 = vunpack.c.l.b16 %v1670
        %v1745 = vunpack.c.h.b16 %v1670
        %v1746 = vunpack.c.l.b16 %v1671
        %v1747 = vunpack.c.h.b16 %v1671
        %v1748 = vunpack.c.l.b16 %v1672
        %v1749 = vunpack.c.h.b16 %v1672
        %v1750 = vunpack.c.l.b16 %v1673
        %v1751 = vunpack.c.h.b16 %v1673
        %v1752 = vunpack.c.l.b16 %v1674
        %v1753 = vunpack.c.h.b16 %v1674
        %v1754 = vunpack.c.l.b16 %v1675
        %v1755 = vunpack.c.h.b16 %v1675
        %v1756 = vunpack.c.l.b16 %v1676
        %v1757 = vunpack.c.h.b16 %v1676
        %v1758 = vunpack.c.l.b16 %v1677
        %v1759 = vunpack.c.h.b16 %v1677
        %v1760 = vunpack.c.l.b16 %v1678
        %v1761 = vunpack.c.h.b16 %v1678
        %v1762 = vunpack.c.l.b16 %v1679
        %v1763 = vunpack.c.h.b16 %v1679
        %v1764 = vunpack.c.l.b16 %v1680
        %v1765 = vunpack.c.h.b16 %v1680
        %v1766 = vunpack.c.l.b16 %v1681
        %v1767 = vunpack.c.h.b16 %v1681
        %v1768 = vunpack.c.l.b16 %v1682
        %v1769 = vunpack.c.h.b16 %v1682
        %v1770 = vunpack.c.l.b16 %v1683
        %v1771 = vunpack.c.h.b16 %v1683
        %v1772 = vpack.c.b16 %v1724, %v1720
        %v1773 = vpack.c.b16 %v1725, %v1721
        %v1774 = vpack.c.b16 %v1726, %v1722
        %v1775 = vpack.c.b16 %v1727, %v1723
        %v1776 = vpack.c.b16 %v1732, %v1728
        %v1777 = vpack.c.b16 %v1733, %v1729
        %v1778 = vpack.c.b16 %v1734, %v1730
        %v1779 = vpack.c.b16 %v1735, %v1731
        %v1780 = vpack.c.b16 %v1740, %v1736
        %v1781 = vpack.c.b16 %v1741, %v1737
        %v1782 = vpack.c.b16 %v1742, %v1738
        %v1783 = vpack.c.b16 %v1743, %v1739
        %v1784 = vpack.c.b16 %v1748, %v1744
        %v1785 = vpack.c.b16 %v1749, %v1745
        %v1786 = vpack.c.b16 %v1750, %v1746
        %v1787 = vpack.c.b16 %v1751, %v1747
        %v1788 = vpack.c.b16 %v1756, %v1752
        %v1789 = vpack.c.b16 %v1757, %v1753
        %v1790 = vpack.c.b16 %v1758, %v1754
        %v1791 = vpack.c.b16 %v1759, %v1755
        %v1792 = vpack.c.b16 %v1764, %v1760
        %v1793 = vpack.c.b16 %v1765, %v1761
        %v1794 = vpack.c.b16 %v1766, %v1762
        %v1795 = vpack.c.b16 %v1767, %v1763
        %v1796 = vpack.c.b16 %v1768, %v1768
        %v1797 = vpack.c.b16 %v1769, %v1769
        %v1798 = vpack.c.b16 %v1770, %v1770
        %v1799 = vpack.c.b16 %v1771, %v1771
        %v1825 = vsel %vm645, %v1657, 0
        %v1828 = vsel %vm807, %v1796, 0
        %v1831 = vsel %vm807, %v1797, 0
        %v1834 = vsel %vm807, %v1798, 0
        %v1837 = vsel %vm807, %v1799, 0
        %1839 = vmatpush.bf16.msra.mxu0 0
        %1840 = vmatpush.bf16.msra.mxu0 %v1828
        %1841 = vmatpush.bf16.msra.mxu0 %v1792
        %1842 = vmatpush.bf16.msra.mxu0 %v1788
        %1843 = vmatpush.bf16.msra.mxu0 %v1784
        %1844 = vmatpush.bf16.msra.mxu0 %v1780
        %1845 = vmatpush.bf16.msra.mxu0 %v1776
        %1846 = vmatpush.bf16.msra.mxu0 %v1772
        %1847 = vmatmul.bf16.gmra.mxu0 %v1825
        %v1848 = vpop.f32.mrf.mxu0
        %v1849 = vadd.f32 %v1686, %v1848
        %v1850 = vpop.f32.mrf.mxu0
        %v1851 = vadd.f32 %v1686, %v1850
        %1852 = vdwg.mxu0
        %1853 = vmatpush.bf16.msra.mxu0 0
        %1854 = vmatpush.bf16.msra.mxu0 %v1831
        %1855 = vmatpush.bf16.msra.mxu0 %v1793
        %1856 = vmatpush.bf16.msra.mxu0 %v1789
        %1857 = vmatpush.bf16.msra.mxu0 %v1785
        %1858 = vmatpush.bf16.msra.mxu0 %v1781
        %1859 = vmatpush.bf16.msra.mxu0 %v1777
        %1860 = vmatpush.bf16.msra.mxu0 %v1773
        %1861 = vmatmul.bf16.gmra.mxu0 %v1825
        %v1862 = vpop.f32.mrf.mxu0
        %v1863 = vadd.f32 %v1687, %v1862
        %v1864 = vpop.f32.mrf.mxu0
        %v1865 = vadd.f32 %v1687, %v1864
        %1866 = vdwg.mxu0
        %1867 = vmatpush.bf16.msra.mxu0 0
        %1868 = vmatpush.bf16.msra.mxu0 %v1834
        %1869 = vmatpush.bf16.msra.mxu0 %v1794
        %1870 = vmatpush.bf16.msra.mxu0 %v1790
        %1871 = vmatpush.bf16.msra.mxu0 %v1786
        %1872 = vmatpush.bf16.msra.mxu0 %v1782
        %1873 = vmatpush.bf16.msra.mxu0 %v1778
        %1874 = vmatpush.bf16.msra.mxu0 %v1774
        %1875 = vmatmul.bf16.gmra.mxu0 %v1825
        %v1876 = vpop.f32.mrf.mxu0
        %v1877 = vadd.f32 %v1688, %v1876
        %v1878 = vpop.f32.mrf.mxu0
        %v1879 = vadd.f32 %v1688, %v1878
        %1880 = vdwg.mxu0
        %1881 = vmatpush.bf16.msra.mxu0 0
        %1882 = vmatpush.bf16.msra.mxu0 %v1837
        %1883 = vmatpush.bf16.msra.mxu0 %v1795
        %1884 = vmatpush.bf16.msra.mxu0 %v1791
        %1885 = vmatpush.bf16.msra.mxu0 %v1787
        %1886 = vmatpush.bf16.msra.mxu0 %v1783
        %1887 = vmatpush.bf16.msra.mxu0 %v1779
        %1888 = vmatpush.bf16.msra.mxu0 %v1775
        %1889 = vmatmul.bf16.gmra.mxu0 %v1825
        %v1890 = vpop.f32.mrf.mxu0
        %v1891 = vadd.f32 %v1689, %v1890
        %v1892 = vpop.f32.mrf.mxu0
        %v1893 = vadd.f32 %v1689, %v1892
        %1894 = vdwg.mxu0
        %v1895 = vmul.f32 %v1849, 0.5
        %v1896 = vmul.f32 %v1863, 0.5
        %v1897 = vmul.f32 %v1877, 0.5
        %v1898 = vmul.f32 %v1891, 0.5
        %v1899 = vmul.f32 %v1851, 0.5
        %v1900 = vmul.f32 %v1865, 0.5
        %v1901 = vmul.f32 %v1879, 0.5
        %v1902 = vmul.f32 %v1893, 0.5
        %v1903 = vmul.f32 %v1849, 0.044715
        %v1904 = vmul.f32 %v1863, 0.044715
        %v1905 = vmul.f32 %v1877, 0.044715
        %v1906 = vmul.f32 %v1891, 0.044715
        %v1907 = vmul.f32 %v1851, 0.044715
        %v1908 = vmul.f32 %v1865, 0.044715
        %v1909 = vmul.f32 %v1879, 0.044715
        %v1910 = vmul.f32 %v1893, 0.044715
        %v1911 = vmul.f32 %v1903, %v1849
        %v1912 = vmul.f32 %v1904, %v1863
        %v1913 = vmul.f32 %v1905, %v1877
        %v1914 = vmul.f32 %v1906, %v1891
        %v1915 = vmul.f32 %v1907, %v1851
        %v1916 = vmul.f32 %v1908, %v1865
        %v1917 = vmul.f32 %v1909, %v1879
        %v1918 = vmul.f32 %v1910, %v1893
        %v1919 = vmul.f32 %v1911, %v1849
        %v1920 = vmul.f32 %v1912, %v1863
        %v1921 = vmul.f32 %v1913, %v1877
        %v1922 = vmul.f32 %v1914, %v1891
        %v1923 = vmul.f32 %v1915, %v1851
        %v1924 = vmul.f32 %v1916, %v1865
        %v1925 = vmul.f32 %v1917, %v1879
        %v1926 = vmul.f32 %v1918, %v1893
        %v1927 = vadd.f32 %v1849, %v1919
        %v1928 = vadd.f32 %v1863, %v1920
        %v1929 = vadd.f32 %v1877, %v1921
        %v1930 = vadd.f32 %v1891, %v1922
        %v1931 = vadd.f32 %v1851, %v1923
        %v1932 = vadd.f32 %v1865, %v1924
        %v1933 = vadd.f32 %v1879, %v1925
        %v1934 = vadd.f32 %v1893, %v1926
        %v1935 = vmul.f32 %v1927, 0.7978846
        %v1936 = vmul.f32 %v1928, 0.7978846
        %v1937 = vmul.f32 %v1929, 0.7978846
        %v1938 = vmul.f32 %v1930, 0.7978846
        %v1939 = vmul.f32 %v1931, 0.7978846
        %v1940 = vmul.f32 %v1932, 0.7978846
        %v1941 = vmul.f32 %v1933, 0.7978846
        %v1942 = vmul.f32 %v1934, 0.7978846
        %v1943 = vtanh.pop %v1935
        %v1944 = vtanh.pop %v1936
        %v1945 = vtanh.pop %v1937
        %v1946 = vtanh.pop %v1938
        %v1947 = vtanh.pop %v1939
        %v1948 = vtanh.pop %v1940
        %v1949 = vtanh.pop %v1941
        %v1950 = vtanh.pop %v1942
        %v1951 = vadd.f32 %v1943, 1.0
        %v1952 = vadd.f32 %v1944, 1.0
        %v1953 = vadd.f32 %v1945, 1.0
        %v1954 = vadd.f32 %v1946, 1.0
        %v1955 = vadd.f32 %v1947, 1.0
        %v1956 = vadd.f32 %v1948, 1.0
        %v1957 = vadd.f32 %v1949, 1.0
        %v1958 = vadd.f32 %v1950, 1.0
        %v1959 = vmul.f32 %v1895, %v1951
        %v1960 = vmul.f32 %v1896, %v1952
        %v1961 = vmul.f32 %v1897, %v1953
        %v1962 = vmul.f32 %v1898, %v1954
        %v1963 = vmul.f32 %v1899, %v1955
        %v1964 = vmul.f32 %v1900, %v1956
        %v1965 = vmul.f32 %v1901, %v1957
        %v1966 = vmul.f32 %v1902, %v1958
        %v1967 = vpack.c.bf16 %v1963, %v1959
        %v1968 = vpack.c.bf16 %v1964, %v1960
        %v1969 = vpack.c.bf16 %v1965, %v1961
        %v1970 = vpack.c.bf16 %v1966, %v1962
        %v1971 = vld [vmem:[%s15] sm:$0xf]
        %v1972 = vld [vmem:[%s15 + $0x4] sm:$0xf]
        %v1973 = vld [vmem:[%s15 + $0x8] sm:$0xf]
        %v1974 = vld [vmem:[%s15 + $0xc] sm:$0xf]
        %v1975 = vld [vmem:[%s15 + $0x10] sm:$0xf]
        %v1976 = vld [vmem:[%s15 + $0x14] sm:$0xf]
        %v1977 = vld [vmem:[%s15 + $0x18] sm:$0xf]
        %v1978 = vld [vmem:[%s15 + $0x1c] sm:$0xf]
        %v1979 = vld [vmem:[%s15 + $0x20] sm:$0xf]
        %v1980 = vld [vmem:[%s15 + $0x24] sm:$0xf]
        %v1981 = vld [vmem:[%s15 + $0x28] sm:$0xf]
        %v1982 = vld [vmem:[%s15 + $0x2c] sm:$0xf]
        %v1983 = vld [vmem:[%s15 + $0x30] sm:$0xf]
        %v1984 = vld [vmem:[%s15 + $0x34] sm:$0xf]
        %v1985 = vld [vmem:[%s15 + $0x38] sm:$0xf]
        %v1986 = vld [vmem:[%s15 + $0x3c] sm:$0xf]
        %v1987 = vld [vmem:[%s15 + $0x40] sm:$0xf]
        %v1988 = vld [vmem:[%s15 + $0x44] sm:$0xf]
        %v1989 = vld [vmem:[%s15 + $0x48] sm:$0xf]
        %v1990 = vld [vmem:[%s15 + $0x4c] sm:$0xf]
        %v1991 = vld [vmem:[%s15 + $0x50] sm:$0xf]
        %v1992 = vld [vmem:[%s15 + $0x54] sm:$0xf]
        %v1993 = vld [vmem:[%s15 + $0x58] sm:$0xf]
        %v1994 = vld [vmem:[%s15 + $0x5c] sm:$0xf]
        %v1995 = vld [vmem:[%s15 + $0x60] sm:$0xf]
        %v1996 = vld [vmem:[%s15 + $0x64] sm:$0xf]
        %v1997 = vld [vmem:[%s15 + $0x68] sm:$0xf]
        %v1998 = vld [vmem:[%s15 + $0x6c] sm:$0xf]
        %v1999 = vld [vmem:[%s15 + $0x70] sm:$0xf]
        %v2000 = vld [vmem:[%s15 + $0x74] sm:$0xf]
        %v2001 = vld [vmem:[%s15 + $0x78] sm:$0xf]
        %v2002 = vld [vmem:[%s15 + $0x7c] sm:$0xf]
        %v2003 = vld [vmem:[%s15 + $0x80] sm:$0xf]
        %v2004 = vld [vmem:[%s15 + $0x84] sm:$0xf]
        %v2005 = vld [vmem:[%s15 + $0x88] sm:$0xf]
        %v2006 = vld [vmem:[%s15 + $0x8c] sm:$0xf]
        %v2007 = vld [vmem:[%s15 + $0x90] sm:$0xf]
        %v2008 = vld [vmem:[%s15 + $0x94] sm:$0xf]
        %v2009 = vld [vmem:[%s15 + $0x98] sm:$0xf]
        %v2010 = vld [vmem:[%s15 + $0x9c] sm:$0xf]
        %v2011 = vld [vmem:[%s15 + $0xa0] sm:$0xf]
        %v2012 = vld [vmem:[%s15 + $0xa4] sm:$0xf]
        %v2013 = vld [vmem:[%s15 + $0xa8] sm:$0xf]
        %v2014 = vld [vmem:[%s15 + $0xac] sm:$0xf]
        %v2015 = vld [vmem:[%s15 + $0xb0] sm:$0xf]
        %v2016 = vld [vmem:[%s15 + $0xb4] sm:$0xf]
        %v2017 = vld [vmem:[%s15 + $0xb8] sm:$0xf]
        %v2018 = vld [vmem:[%s15 + $0xbc] sm:$0xf]
        %v2019 = vld [vmem:[%s15 + $0xc0] sm:$0xf]
        %v2020 = vld [vmem:[%s15 + $0xc4] sm:$0xf]
        %v2021 = vld [vmem:[%s16] sm:$0x1]
        %v2023 = vperm.slane %v2021, 0
        %v2075 = vunpack.c.l.b16 %v1971
        %v2076 = vunpack.c.l.b16 %v1972
        %v2077 = vunpack.c.l.b16 %v1973
        %v2078 = vunpack.c.l.b16 %v1974
        %v2079 = vunpack.c.l.b16 %v1975
        %v2080 = vunpack.c.l.b16 %v1976
        %v2081 = vunpack.c.l.b16 %v1977
        %v2082 = vunpack.c.l.b16 %v1978
        %v2083 = vunpack.c.l.b16 %v1979
        %v2084 = vunpack.c.l.b16 %v1980
        %v2085 = vunpack.c.l.b16 %v1981
        %v2086 = vunpack.c.l.b16 %v1982
        %v2087 = vunpack.c.l.b16 %v1983
        %v2088 = vunpack.c.l.b16 %v1984
        %v2089 = vunpack.c.l.b16 %v1985
        %v2090 = vunpack.c.l.b16 %v1986
        %v2091 = vunpack.c.l.b16 %v1987
        %v2092 = vunpack.c.l.b16 %v1988
        %v2093 = vunpack.c.l.b16 %v1989
        %v2094 = vunpack.c.l.b16 %v1990
        %v2095 = vunpack.c.l.b16 %v1991
        %v2096 = vunpack.c.l.b16 %v1992
        %v2097 = vunpack.c.l.b16 %v1993
        %v2098 = vunpack.c.l.b16 %v1994
        %v2099 = vunpack.c.l.b16 %v1995
        %v2100 = vunpack.c.l.b16 %v1996
        %v2101 = vunpack.c.l.b16 %v1997
        %v2102 = vunpack.c.l.b16 %v1998
        %v2103 = vunpack.c.l.b16 %v1999
        %v2104 = vunpack.c.l.b16 %v2000
        %v2105 = vunpack.c.l.b16 %v2001
        %v2106 = vunpack.c.l.b16 %v2002
        %v2107 = vunpack.c.l.b16 %v2003
        %v2108 = vunpack.c.l.b16 %v2004
        %v2109 = vunpack.c.l.b16 %v2005
        %v2110 = vunpack.c.l.b16 %v2006
        %v2111 = vunpack.c.l.b16 %v2007
        %v2112 = vunpack.c.l.b16 %v2008
        %v2113 = vunpack.c.l.b16 %v2009
        %v2114 = vunpack.c.l.b16 %v2010
        %v2115 = vunpack.c.l.b16 %v2011
        %v2116 = vunpack.c.l.b16 %v2012
        %v2117 = vunpack.c.l.b16 %v2013
        %v2118 = vunpack.c.l.b16 %v2014
        %v2119 = vunpack.c.l.b16 %v2015
        %v2120 = vunpack.c.l.b16 %v2016
        %v2121 = vunpack.c.l.b16 %v2017
        %v2122 = vunpack.c.l.b16 %v2018
        %v2123 = vunpack.c.l.b16 %v2019
        %v2124 = vunpack.c.l.b16 %v2020
        %v2125 = vpack.c.b16 %v2076, %v2075
        %v2126 = vpack.c.b16 %v2078, %v2077
        %v2127 = vpack.c.b16 %v2080, %v2079
        %v2128 = vpack.c.b16 %v2082, %v2081
        %v2129 = vpack.c.b16 %v2084, %v2083
        %v2130 = vpack.c.b16 %v2086, %v2085
        %v2131 = vpack.c.b16 %v2088, %v2087
        %v2132 = vpack.c.b16 %v2090, %v2089
        %v2133 = vpack.c.b16 %v2092, %v2091
        %v2134 = vpack.c.b16 %v2094, %v2093
        %v2135 = vpack.c.b16 %v2096, %v2095
        %v2136 = vpack.c.b16 %v2098, %v2097
        %v2137 = vpack.c.b16 %v2100, %v2099
        %v2138 = vpack.c.b16 %v2102, %v2101
        %v2139 = vpack.c.b16 %v2104, %v2103
        %v2140 = vpack.c.b16 %v2106, %v2105
        %v2141 = vpack.c.b16 %v2108, %v2107
        %v2142 = vpack.c.b16 %v2110, %v2109
        %v2143 = vpack.c.b16 %v2112, %v2111
        %v2144 = vpack.c.b16 %v2114, %v2113
        %v2145 = vpack.c.b16 %v2116, %v2115
        %v2146 = vpack.c.b16 %v2118, %v2117
        %v2147 = vpack.c.b16 %v2120, %v2119
        %v2148 = vpack.c.b16 %v2122, %v2121
        %v2149 = vpack.c.b16 %v2124, %v2123
        %vm2175 = vcmask 130048
        %v2177 = vsel %vm2175, %v1970, 0
        %2179 = vmatpush.bf16.msra.mxu0 %v2132
        %2180 = vmatpush.bf16.msra.mxu0 %v2131
        %2181 = vmatpush.bf16.msra.mxu0 %v2130
        %2182 = vmatpush.bf16.msra.mxu0 %v2129
        %2183 = vmatpush.bf16.msra.mxu0 %v2128
        %2184 = vmatpush.bf16.msra.mxu0 %v2127
        %2185 = vmatpush.bf16.msra.mxu0 %v2126
        %2186 = vmatpush.bf16.msra.mxu0 %v2125
        %2187 = vmatmul.bf16.gmra.mxu0 %v1967
        %v2188 = vpop.f32.mrf.mxu0
        %v2189 = vadd.f32 %v2023, %v2188
        %v2190 = vpop.f32.mrf.mxu0
        %v2191 = vadd.f32 %v2023, %v2190
        %2192 = vdwg.mxu0
        %2193 = vmatpush.bf16.msra.mxu0 %v2140
        %2194 = vmatpush.bf16.msra.mxu0 %v2139
        %2195 = vmatpush.bf16.msra.mxu0 %v2138
        %2196 = vmatpush.bf16.msra.mxu0 %v2137
        %2197 = vmatpush.bf16.msra.mxu0 %v2136
        %2198 = vmatpush.bf16.msra.mxu0 %v2135
        %2199 = vmatpush.bf16.msra.mxu0 %v2134
        %2200 = vmatpush.bf16.msra.mxu0 %v2133
        %2201 = vmatmul.bf16.gmra.mxu0 %v1968
        %v2202 = vpop.f32.mrf.mxu0
        %v2203 = vadd.f32 %v2189, %v2202
        %v2204 = vpop.f32.mrf.mxu0
        %v2205 = vadd.f32 %v2191, %v2204
        %2206 = vdwg.mxu0
        %2207 = vmatpush.bf16.msra.mxu0 %v2148
        %2208 = vmatpush.bf16.msra.mxu0 %v2147
        %2209 = vmatpush.bf16.msra.mxu0 %v2146
        %2210 = vmatpush.bf16.msra.mxu0 %v2145
        %2211 = vmatpush.bf16.msra.mxu0 %v2144
        %2212 = vmatpush.bf16.msra.mxu0 %v2143
        %2213 = vmatpush.bf16.msra.mxu0 %v2142
        %2214 = vmatpush.bf16.msra.mxu0 %v2141
        %2215 = vmatmul.bf16.gmra.mxu0 %v1969
        %v2216 = vpop.f32.mrf.mxu0
        %v2217 = vadd.f32 %v2203, %v2216
        %v2218 = vpop.f32.mrf.mxu0
        %v2219 = vadd.f32 %v2205, %v2218
        %2220 = vdwg.mxu0
        %2221 = vmatpush.bf16.msra.mxu0 0
        %2222 = vmatpush.bf16.msra.mxu0 0
        %2223 = vmatpush.bf16.msra.mxu0 0
        %2224 = vmatpush.bf16.msra.mxu0 0
        %2225 = vmatpush.bf16.msra.mxu0 0
        %2226 = vmatpush.bf16.msra.mxu0 0
        %2227 = vmatpush.bf16.msra.mxu0 0
        %2228 = vmatpush.bf16.msra.mxu0 %v2149
        %2229 = vmatmul.bf16.gmra.mxu0 %v2177
        %v2230 = vpop.f32.mrf.mxu0
        %v2231 = vadd.f32 %v2217, %v2230
        %v2232 = vpop.f32.mrf.mxu0
        %v2233 = vadd.f32 %v2219, %v2232
        %2234 = vdwg.mxu0
        %v2235 = vadd.f32 %v1567, %v2231
        %v2236 = vadd.f32 %v1568, %v2233
        %2237 = vst.msk [vmem:[%s639] sm:$0xff] %vm645, %v2235
        %2238 = vst.msk [vmem:[%s639 + $0x8] sm:$0x1] %vm649, %v2236
        %v2239 = vpack.c.bf16 %v2235, %v2235
        %v2240 = vld [vmem:[%s17] sm:$0xf]
        %v2241 = vld [vmem:[%s17 + $0x4] sm:$0xf]
        %v2242 = vld [vmem:[%s17 + $0x8] sm:$0xf]
        %v2243 = vld [vmem:[%s17 + $0xc] sm:$0xf]
        %v2244 = vld [vmem:[%s17 + $0x10] sm:$0xf]
        %v2245 = vld [vmem:[%s17 + $0x14] sm:$0xf]
        %v2246 = vld [vmem:[%s17 + $0x18] sm:$0xf]
        %v2247 = vld [vmem:[%s17 + $0x1c] sm:$0xf]
        %v2248 = vld [vmem:[%s17 + $0x20] sm:$0xf]
        %v2249 = vld [vmem:[%s17 + $0x24] sm:$0xf]
        %v2250 = vld [vmem:[%s17 + $0x28] sm:$0xf]
        %v2251 = vld [vmem:[%s17 + $0x2c] sm:$0xf]
        %v2252 = vld [vmem:[%s17 + $0x30] sm:$0x3]
        %v2253 = vld [vmem:[%s18] sm:$0x1]
        %v2267 = vunpack.c.l.b16 %v2240
        %v2268 = vunpack.c.l.b16 %v2241
        %v2269 = vunpack.c.l.b16 %v2242
        %v2270 = vunpack.c.l.b16 %v2243
        %v2271 = vunpack.c.l.b16 %v2244
        %v2272 = vunpack.c.l.b16 %v2245
        %v2273 = vunpack.c.l.b16 %v2246
        %v2274 = vunpack.c.l.b16 %v2247
        %v2275 = vunpack.c.l.b16 %v2248
        %v2276 = vunpack.c.l.b16 %v2249
        %v2277 = vunpack.c.l.b16 %v2250
        %v2278 = vunpack.c.l.b16 %v2251
        %v2279 = vunpack.c.l.b16 %v2252
        %v2280 = vpack.c.b16 %v2268, %v2267
        %v2281 = vpack.c.b16 %v2270, %v2269
        %v2282 = vpack.c.b16 %v2272, %v2271
        %v2283 = vpack.c.b16 %v2274, %v2273
        %v2284 = vpack.c.b16 %v2276, %v2275
        %v2285 = vpack.c.b16 %v2278, %v2277
        %v2286 = vpack.c.b16 %v2279, %v2279
        %v2294 = vsel %vm645, %v2239, 0
        %v2297 = vsel %vm807, %v2286, 0
        %2299 = vmatpush.bf16.msra.mxu0 0
        %2300 = vmatpush.bf16.msra.mxu0 %v2297
        %2301 = vmatpush.bf16.msra.mxu0 %v2285
        %2302 = vmatpush.bf16.msra.mxu0 %v2284
        %2303 = vmatpush.bf16.msra.mxu0 %v2283
        %2304 = vmatpush.bf16.msra.mxu0 %v2282
        %2305 = vmatpush.bf16.msra.mxu0 %v2281
        %2306 = vmatpush.bf16.msra.mxu0 %v2280
        %2307 = vmatmul.bf16.gmra.mxu0 %v2294
        %v2308 = vpop.f32.mrf.mxu0
        %v2309 = vadd.f32 %v2253, %v2308
        %v2310 = vpop.f32.mrf.mxu0
        %2311 = vdwg.mxu0
        %vm2312 = vcmask 40960
        %2313 = vst.msk [vmem:[%s629] sm:$0x1] %vm2312, %v2309
        %p2314 = scmp.lt.s32.totalorder %s35, 1
        %s2315 = scalar_select %p2314, %s35, 1
        %s2316 = smul.addr %s2315, 2
        %s2317 = smul.addr %s2316, 8
        %s2318 = scalar_lea.vmem %s19, %s2317
        %s2319 = sand.u32 %s473, 1
        %s2320 = scalar_lea.sflag [#allocation3], %s2319
        %s2321 = sand.u32 %s473, 1
        %s2322 = scalar_lea.vmem [#allocation2], %s2321
        // Predicated region
        $region97: #{forward.1} parent=95 // pred_check
          %p2323 = pneg %p457
        $region98: #{forward.1} parent=95 // pred_check_branch
          %2325 = sbr.rel (%p2323) target = $region100
        $region99: #{forward.1} parent=95 // pred_region
          _
        $region100: #{forward.1} parent=95 // pred_fallthru
          _
        // Predicated region
        $region101: #{forward.1} parent=95 // pred_check
          %p2326 = pneg %p483
        $region102: #{forward.1} parent=95 // pred_check_branch
          %2328 = sbr.rel (%p2326) target = $region104
        $region103: #{forward.1} parent=95 // pred_region
          %2330 = vsyncadd %s2320, 0
          %s2331 = scalar_lea.hbm %s20, %s35
          %s2333 = sshll.u32 %s2322, 4
          %s2334 = int_to_ptr.vmem [resolvable:$true] %s2333
          %s2335 = sshll.u32 %s2331, 4
          %s2336 = int_to_ptr.hbm [resolvable:$true] %s2335
          %2338 = dma.vmem_to_hbm [thread:$0]  %s2334, 16, %s2336, %s2320
        $region104: #{forward.1} parent=95 // pred_fallthru
          _
      $region96: #{forward.1} parent=5 // pred_fallthru
        _
      %p2339 = scmp.le.s32.totalorder 2, %s30
      // Predicated region
      $region105: #{forward.1} parent=5 // pred_check
        %p2340 = pneg %p2339
      $region106: #{forward.1} parent=5 // pred_check_branch
        %2342 = sbr.rel (%p2340) target = $region108
      $region107: #{forward.1} parent=5 // pred_region
        %s2343 = ssub.s32 %s30, 2
        // Predicated region
        $region109: #{forward.1} parent=107 // pred_check
          %p2344 = pneg %p463
        $region110: #{forward.1} parent=107 // pred_check_branch
          %2346 = sbr.rel (%p2344) target = $region112
        $region111: #{forward.1} parent=107 // pred_region
          %p2347 = scmp.lt.s32.totalorder %s36, 1
          %s2348 = scalar_select %p2347, %s36, 1
          %s2349 = smul.addr %s2348, 2
          %s2350 = smul.addr %s2349, 8
          %s2351 = scalar_lea.vmem %s19, %s2350
        $region112: #{forward.1} parent=107 // pred_fallthru
          _
        // Predicated region
        $region113: #{forward.1} parent=107 // pred_check
          %p2352 = pneg %p489
        $region114: #{forward.1} parent=107 // pred_check_branch
          %2354 = sbr.rel (%p2352) target = $region116
        $region115: #{forward.1} parent=107 // pred_region
          %s2355 = sand.u32 %s474, 1
          %s2356 = scalar_lea.sflag [#allocation3], %s2355
          %s2357 = sand.u32 %s474, 1
          %s2358 = scalar_lea.vmem [#allocation2], %s2357
          %2360 = dma.done %s2356, 16
        $region116: #{forward.1} parent=107 // pred_fallthru
          _
      $region108: #{forward.1} parent=5 // pred_fallthru
        _
    $region6: #{forward.1} parent=1 // loop_footer
      %s34 = sadd.s32 1, %s30
    $region7: #{forward.1} parent=1 // loop_footer_branch
      %29 = sbr.rel target = $region3
    $region8: #{forward.1} parent=1 // loop_exit
      _
    %2361 = vsyncpa [#allocation3], 1
    %s2362 = scalar_lea.sflag [#allocation3], 1
    %2363 = vsyncpa %s2362, 1

</llo_original>
